<compile_context>
chip_gen: v5e
topology: v5e:2x2
jax: 0.10.0
libtpu: 0.0.40
codegen_flags: <defaults>
</compile_context>

<pallas_src>
import functools

import jax
import jax.numpy as jnp
from jax import lax
from jax.experimental import pallas as pl
from jax.experimental.pallas import tpu as pltpu

EPS = 1e-12
LANE = 128            # lane width (last dim of every slab)
SUB = 16              # sublane rounding quantum (keeps bf16 output tiles aligned too)
S_BLK_MAX = 256       # max sublanes per grid step
VMEM_TARGET = 24 << 20      # target double-buffered in+out working set per step
VMEM_HEADROOM = 12 << 20
VMEM_MIN = 32 << 20
VMEM_CAP = 64 << 20
MAX_INLINE_BATCH = 32       # in-kernel cell resolution (SMEM table) up to this many graphs

EDGE_OPS_ALL = ("normij", "normij_sym")
TRIPLET_OPS_ALL = ("normij", "normij_sym", "normik", "normik_sym",
                   "angle", "angle_sym", "area", "area_sym")


# ------------------------- in-kernel helpers (all (s_blk, LANE) slabs) --------------------

def _cart(cell, e):
    # r[b] = sum_a e[a] * cell[a, b]   (cell entries are the 9 row-major lattice entries)
    return [sum(e[a] * cell[3 * a + b] for a in range(3)) for b in range(3)]


def _inv_norm(v):
    d2 = v[0] * v[0] + v[1] * v[1] + v[2] * v[2]
    return lax.rsqrt(jnp.maximum(d2, EPS * EPS))     # == 1 / max(||v||, EPS), EUP slot


def _cross3(u, v):
    return [u[1] * v[2] - u[2] * v[1],
            u[2] * v[0] - u[0] * v[2],
            u[0] * v[1] - u[1] * v[0]]


def _outer_scaled(e, r, s):
    return [[e[a] * r[b] * s for b in range(3)] for a in range(3)]


def _sym(G):
    return [[0.5 * (G[a][b] + G[b][a]) for b in range(3)] for a in range(3)]


def _cell_from_table(tab_ref, batch, n_graphs):
    # One-hot select of the per-graph cell from the tiny SMEM table.
    comps = []
    for c in range(9):
        val = jnp.zeros(batch.shape, jnp.float32) + tab_ref[c]   # graph 0 value
        for b in range(1, n_graphs):
            val = jnp.where(batch == b, tab_ref[b * 9 + c], val)
        comps.append(val)
    return comps


# ------------------------------------ kernel factory ---------------------------------------

def _make_kernel(op_names, is_triplet, inline_cell, n_graphs):
    want = frozenset(op_names)
    base = {name: 9 * i for i, name in enumerate(op_names)}

    def store(out_ref, name, M):
        # Store a full 3x3 grad immediately (short live ranges -> fewer spills).
        r = base[name]
        for a in range(3):
            for b in range(3):
                out_ref[r] = M[a][b].astype(out_ref.dtype)
                r += 1

    def compute(out_ref, cell, eij, eik):
        u = _cart(cell, eij)                         # cartesian r_ij
        if not is_triplet:
            G = _outer_scaled(eij, u, _inv_norm(u))
            if "normij" in want:
                store(out_ref, "normij", G)
            if "normij_sym" in want:
                store(out_ref, "normij_sym", _sym(G))
            return

        v = _cart(cell, eik)                         # cartesian r_ik
        need_du = bool(want & {"normij", "normij_sym", "angle", "angle_sym"})
        need_dv = bool(want & {"normik", "normik_sym", "angle", "angle_sym"})
        inv_du = _inv_norm(u) if need_du else None
        inv_dv = _inv_norm(v) if need_dv else None

        if want & {"normij", "normij_sym"}:
            G = _outer_scaled(eij, u, inv_du)
            if "normij" in want:
                store(out_ref, "normij", G)
            if "normij_sym" in want:
                store(out_ref, "normij_sym", _sym(G))
        if want & {"normik", "normik_sym"}:
            G = _outer_scaled(eik, v, inv_dv)
            if "normik" in want:
                store(out_ref, "normik", G)
            if "normik_sym" in want:
                store(out_ref, "normik_sym", _sym(G))
        if want & {"angle", "angle_sym"}:
            dot_uv = u[0] * v[0] + u[1] * v[1] + u[2] * v[2]
            inv_dudv = inv_du * inv_dv
            c = dot_uv * inv_dudv
            dth_dc = -lax.rsqrt(jnp.maximum(1.0 - c * c, EPS))
            inv_du2 = inv_du * inv_du
            inv_dv2 = inv_dv * inv_dv
            dc_du = [v[b] * inv_dudv - c * u[b] * inv_du2 for b in range(3)]
            dc_dv = [u[b] * inv_dudv - c * v[b] * inv_dv2 for b in range(3)]
            G = [[dth_dc * (eij[a] * dc_du[b] + eik[a] * dc_dv[b])
                  for b in range(3)] for a in range(3)]
            if "angle" in want:
                store(out_ref, "angle", G)
            if "angle_sym" in want:
                store(out_ref, "angle_sym", _sym(G))
        if want & {"area", "area_sym"}:
            w = _cross3(u, v)
            half_inv_nw = 0.5 * _inv_norm(w)
            dA_du = _cross3(v, w)
            dA_dv = _cross3(w, u)
            G = [[half_inv_nw * (eij[a] * dA_du[b] + eik[a] * dA_dv[b])
                  for b in range(3)] for a in range(3)]
            if "area" in want:
                store(out_ref, "area", G)
            if "area_sym" in want:
                store(out_ref, "area_sym", _sym(G))

    if inline_cell:
        if is_triplet:
            def kernel(tab_ref, batch_ref, eij_ref, eik_ref, out_ref):
                cell = _cell_from_table(tab_ref, batch_ref[0], n_graphs)
                compute(out_ref, cell,
                        [eij_ref[a] for a in range(3)],
                        [eik_ref[a] for a in range(3)])
        else:
            def kernel(tab_ref, batch_ref, eij_ref, out_ref):
                cell = _cell_from_table(tab_ref, batch_ref[0], n_graphs)
                compute(out_ref, cell, [eij_ref[a] for a in range(3)], None)
    else:
        if is_triplet:
            def kernel(cell_ref, eij_ref, eik_ref, out_ref):
                compute(out_ref, [cell_ref[i] for i in range(9)],
                        [eij_ref[a] for a in range(3)],
                        [eik_ref[a] for a in range(3)])
        else:
            def kernel(cell_ref, eij_ref, out_ref):
                compute(out_ref, [cell_ref[i] for i in range(9)],
                        [eij_ref[a] for a in range(3)], None)
    return kernel


# ------------------------------------ wrappers ----------------------------------------------

def _plan(n, n_in_ch, n_out_ch, out_bytes):
    """Pick sublane block size, grid, padded length and VMEM limit (all static ints)."""
    rows = -(-n // LANE)
    rows_r = ((rows + SUB - 1) // SUB) * SUB
    per_row = (n_in_ch * 4 + n_out_ch * out_bytes) * LANE        # bytes per sublane row
    s_blk = (VMEM_TARGET // (2 * per_row)) // SUB * SUB
    s_blk = max(SUB, min(S_BLK_MAX, s_blk))
    s_blk = min(s_blk, rows_r)
    # Keep >= 2 grid steps when possible so megacore (v7x) can shard the grid.
    if s_blk == rows_r and rows_r >= 2 * SUB:
        s_blk = (-(-(rows_r // 2) // SUB)) * SUB
    grid = -(-rows_r // s_blk)
    n_pad = grid * s_blk * LANE
    working = 2 * per_row * s_blk
    vmem_limit = int(min(VMEM_CAP, max(VMEM_MIN, working + VMEM_HEADROOM)))
    return s_blk, grid, n_pad, vmem_limit


def _to_cm3(x, n_pad, dtype):
    # [N] or [N, C] -> [C, n_pad // LANE, LANE]  channel-major, lane-dense layout.
    if x.ndim == 1:
        x = x[:, None]
    N, C = x.shape
    x = jnp.pad(x.astype(dtype), ((0, n_pad - N), (0, 0)))
    return x.T.reshape(C, n_pad // LANE, LANE)


def _finish(out_cm, K, N, n_pad, channel_major):
    out = out_cm.reshape(K, 3, 3, n_pad)[..., :N]
    if channel_major:
        return out                       # [K, 3, 3, N] (no extra HBM transpose pass)
    return jnp.moveaxis(out, -1, 0)      # [N, K, 3, 3] (matches PyTorch stacking)


def _run(cell_flat, batch_idx, e_ij, e_ik, op_names, out_dtype, inline_cell):
    is_triplet = e_ik is not None
    N = e_ij.shape[0]
    K = len(op_names)
    B = cell_flat.shape[0]
    n_edge_ch = 6 if is_triplet else 3
    n_in_ch = (1 + n_edge_ch) if inline_cell else (9 + n_edge_ch)
    out_bytes = jnp.dtype(out_dtype).itemsize
    s_blk, grid, n_pad, vmem_limit = _plan(N, n_in_ch, K * 9, out_bytes)
    R_total = n_pad // LANE

    inputs = []
    in_specs = []
    if inline_cell:
        # Tiny per-graph cell table lives in SMEM; batch index is a 4 B/edge channel.
        inputs.append(cell_flat.reshape(-1).astype(jnp.float32))
        in_specs.append(pl.BlockSpec(memory_space=pltpu.MemorySpace.SMEM))
        inputs.append(_to_cm3(batch_idx.astype(jnp.int32), n_pad, jnp.int32))
        in_specs.append(pl.BlockSpec((1, s_blk, LANE), lambda i: (0, i, 0)))
    else:
        inputs.append(_to_cm3(cell_flat[batch_idx], n_pad, jnp.float32))
        in_specs.append(pl.BlockSpec((9, s_blk, LANE), lambda i: (0, i, 0)))
    inputs.append(_to_cm3(e_ij, n_pad, jnp.float32))
    in_specs.append(pl.BlockSpec((3, s_blk, LANE), lambda i: (0, i, 0)))
    if is_triplet:
        inputs.append(_to_cm3(e_ik, n_pad, jnp.float32))
        in_specs.append(pl.BlockSpec((3, s_blk, LANE), lambda i: (0, i, 0)))

    kernel = _make_kernel(tuple(op_names), is_triplet, inline_cell, n_graphs=B)
    out_cm = pl.pallas_call(
        kernel,
        out_shape=jax.ShapeDtypeStruct((K * 9, R_total, LANE), out_dtype),
        grid=(grid,),
        in_specs=in_specs,
        out_specs=pl.BlockSpec((K * 9, s_blk, LANE), lambda i: (0, i, 0)),
        compiler_params=pltpu.CompilerParams(
            dimension_semantics=("parallel",),
            vmem_limit_bytes=vmem_limit),
    )(*inputs)
    return out_cm, n_pad


@functools.partial(jax.jit, static_argnames=(
    "edge_ops", "triplet_ops", "out_dtype", "max_inline_batch", "channel_major_output"))
def op_grad_forward(cell, batch_edges, edges_e_ij, batch_triplets,
                    triplets_e_ij, triplets_e_ik,
                    edge_ops=EDGE_OPS_ALL,
                    triplet_ops=("normij", "normik", "angle", "area"),
                    out_dtype=jnp.float32,
                    max_inline_batch=MAX_INLINE_BATCH,
                    channel_major_output=False):
    """Equivalent of OpGrad.forward(geometry).  Returns (edges_ops, triplets_ops)."""
    for name in edge_ops:
        assert name in EDGE_OPS_ALL
    for name in triplet_ops:
        assert name in TRIPLET_OPS_ALL
    B = cell.shape[0]
    cell_flat = cell.reshape(B, 9)                       # row-major 3x3 -> 9
    inline_cell = B <= max_inline_batch
    edges_out = None
    triplets_out = None
    if len(edge_ops) > 0:
        raw, n_pad = _run(cell_flat, batch_edges, edges_e_ij, None,
                          edge_ops, out_dtype, inline_cell)
        edges_out = _finish(raw, len(edge_ops), edges_e_ij.shape[0], n_pad,
                            channel_major_output)
    if len(triplet_ops) > 0:
        raw, n_pad = _run(cell_flat, batch_triplets, triplets_e_ij, triplets_e_ik,
                          triplet_ops, out_dtype, inline_cell)
        triplets_out = _finish(raw, len(triplet_ops), triplets_e_ij.shape[0], n_pad,
                               channel_major_output)
    return edges_out, triplets_out


# -------------------------------- pure-JAX reference -----------------------------------------

def _ref_grads(cell_g, e_ij, e_ik=None):
    r_ij = jnp.einsum("na,nab->nb", e_ij, cell_g)
    inv_dij = 1.0 / jnp.maximum(jnp.linalg.norm(r_ij, axis=-1), EPS)
    Gij = e_ij[:, :, None] * r_ij[:, None, :] * inv_dij[:, None, None]
    out = {"normij": Gij, "normij_sym": 0.5 * (Gij + jnp.swapaxes(Gij, 1, 2))}
    if e_ik is not None:
        r_ik = jnp.einsum("na,nab->nb", e_ik, cell_g)
        inv_dik = 1.0 / jnp.maximum(jnp.linalg.norm(r_ik, axis=-1), EPS)
        Gik = e_ik[:, :, None] * r_ik[:, None, :] * inv_dik[:, None, None]
        out["normik"] = Gik
        out["normik_sym"] = 0.5 * (Gik + jnp.swapaxes(Gik, 1, 2))
        c = (r_ij * r_ik).sum(-1) * inv_dij * inv_dik
        dth_dc = -1.0 / jnp.sqrt(jnp.maximum(1.0 - c * c, EPS))
        dc_du = r_ik * (inv_dij * inv_dik)[:, None] - c[:, None] * r_ij * (inv_dij ** 2)[:, None]
        dc_dv = r_ij * (inv_dij * inv_dik)[:, None] - c[:, None] * r_ik * (inv_dik ** 2)[:, None]
        Gang = dth_dc[:, None, None] * (e_ij[:, :, None] * dc_du[:, None, :]
                                        + e_ik[:, :, None] * dc_dv[:, None, :])
        out["angle"] = Gang
        out["angle_sym"] = 0.5 * (Gang + jnp.swapaxes(Gang, 1, 2))
        w = jnp.cross(r_ij, r_ik)
        inv_nw = 1.0 / jnp.maximum(jnp.linalg.norm(w, axis=-1), EPS)
        Garea = 0.5 * inv_nw[:, None, None] * (e_ij[:, :, None] * jnp.cross(r_ik, w)[:, None, :]
                                               + e_ik[:, :, None] * jnp.cross(w, r_ij)[:, None, :])
        out["area"] = Garea
        out["area_sym"] = 0.5 * (Garea + jnp.swapaxes(Garea, 1, 2))
    return out


def _reference(cell, batch_edges, edges_e_ij, batch_triplets, triplets_e_ij,
               triplets_e_ik, edge_ops, triplet_ops):
    ge = _ref_grads(cell[batch_edges], edges_e_ij)
    gt = _ref_grads(cell[batch_triplets], triplets_e_ij, triplets_e_ik)
    edges = jnp.stack([ge[n] for n in edge_ops], axis=1)
    trips = jnp.stack([gt[n] for n in triplet_ops], axis=1)
    return edges, trips


# ---------------------------------------- main ------------------------------------------------

if __name__ == "__main__":
    key = jax.random.PRNGKey(0)
    B, E, T = 2, 200, 160
    k1, k2, k3, k4, k5, k6 = jax.random.split(key, 6)

    cell = jnp.eye(3, dtype=jnp.float32)[None] * 3.0 \
        + 0.3 * jax.random.normal(k1, (B, 3, 3), dtype=jnp.float32)
    batch_edges = jax.random.randint(k2, (E,), 0, B)
    edges_e_ij = jax.random.normal(k3, (E, 3), dtype=jnp.float32)
    batch_triplets = jax.random.randint(k4, (T,), 0, B)
    triplets_e_ij = jax.random.normal(k5, (T, 3), dtype=jnp.float32)
    triplets_e_ik = jax.random.normal(k6, (T, 3), dtype=jnp.float32)

    edge_ops = ("normij", "normij_sym")
    triplet_ops = ("normij", "normik", "angle", "area")

    # 1) Default path: in-kernel cell resolution (SMEM table), f32 output.
    edges_out, triplets_out = op_grad_forward(
        cell, batch_edges, edges_e_ij, batch_triplets, triplets_e_ij, triplets_e_ik,
        edge_ops=edge_ops, triplet_ops=triplet_ops)
    jax.block_until_ready((edges_out, triplets_out))
    ref_edges, ref_trips = _reference(
        cell, batch_edges, edges_e_ij, batch_triplets, triplets_e_ij, triplets_e_ik,
        edge_ops, triplet_ops)
    assert edges_out.shape == (E, len(edge_ops), 3, 3)
    assert triplets_out.shape == (T, len(triplet_ops), 3, 3)
    assert jnp.allclose(edges_out, ref_edges, rtol=1e-4, atol=1e-4)
    assert jnp.allclose(triplets_out, ref_trips, rtol=1e-4, atol=1e-4)

    # 2) Full op set (exercises incremental-store paths for every operator).
    edges_out2, triplets_out2 = op_grad_forward(
        cell, batch_edges, edges_e_ij, batch_triplets, triplets_e_ij, triplets_e_ik,
        edge_ops=EDGE_OPS_ALL, triplet_ops=TRIPLET_OPS_ALL)
    jax.block_until_ready((edges_out2, triplets_out2))
    ref_edges2, ref_trips2 = _reference(
        cell, batch_edges, edges_e_ij, batch_triplets, triplets_e_ij, triplets_e_ik,
        EDGE_OPS_ALL, TRIPLET_OPS_ALL)
    assert jnp.allclose(edges_out2, ref_edges2, rtol=1e-4, atol=1e-4)
    assert jnp.allclose(triplets_out2, ref_trips2, rtol=1e-4, atol=1e-4)

    # 3) Fallback path: wrapper-side cell gather (used when B > max_inline_batch).
    edges_out3, triplets_out3 = op_grad_forward(
        cell, batch_edges, edges_e_ij, batch_triplets, triplets_e_ij, triplets_e_ik,
        edge_ops=edge_ops, triplet_ops=triplet_ops, max_inline_batch=0)
    jax.block_until_ready((edges_out3, triplets_out3))
    assert jnp.allclose(edges_out3, ref_edges, rtol=1e-4, atol=1e-4)
    assert jnp.allclose(triplets_out3, ref_trips, rtol=1e-4, atol=1e-4)

    # 4) bf16 output (halves output HBM traffic; looser tolerance).
    edges_bf, trips_bf = op_grad_forward(
        cell, batch_edges, edges_e_ij, batch_triplets, triplets_e_ij, triplets_e_ik,
        edge_ops=edge_ops, triplet_ops=triplet_ops, out_dtype=jnp.bfloat16)
    jax.block_until_ready((edges_bf, trips_bf))
    assert jnp.allclose(edges_bf.astype(jnp.float32), ref_edges, rtol=5e-2, atol=5e-2)
    assert jnp.allclose(trips_bf.astype(jnp.float32), ref_trips, rtol=5e-2, atol=5e-2)

    print("KERNEL_OK")
</pallas_src>

<mosaic_0001>
module attributes {stable_mosaic.version = 11 : i64} {
  func.func @kernel(%arg0: i32, %arg1: memref<18xf32, #tpu.memory_space<smem>>, %arg2: memref<1x16x128xi32, #tpu.memory_space<vmem>>, %arg3: memref<3x16x128xf32, #tpu.memory_space<vmem>>, %arg4: memref<18x16x128xf32, #tpu.memory_space<vmem>>) attributes {dimension_semantics = [#tpu.dimension_semantics<parallel>], iteration_bounds = array<i64: 1>, scalar_prefetch = 0 : i64, scratch_operands = 0 : i64, tpu.core_type = #tpu.core_type<tc>, window_params = [{transform_indices = @transform_0, window_bounds = array<i64: 18>}, {transform_indices = @transform_1, window_bounds = array<i64: 1, 16, 128>}, {transform_indices = @transform_2, window_bounds = array<i64: 3, 16, 128>}, {transform_indices = @transform_3, window_bounds = array<i64: 18, 16, 128>}]} {
    %c0 = arith.constant 0 : index
    %c0_0 = arith.constant 0 : index
    %c0_1 = arith.constant 0 : index
    %0 = vector.load %arg2[%c0, %c0_0, %c0_1] : memref<1x16x128xi32, #tpu.memory_space<vmem>>, vector<1x16x128xi32>
    %1 = vector.shape_cast %0 : vector<1x16x128xi32> to vector<16x128xi32>
    %cst = arith.constant 0.000000e+00 : f32
    %2 = vector.broadcast %cst : f32 to vector<16x128xf32>
    %c0_2 = arith.constant 0 : index
    %3 = memref.load %arg1[%c0_2] : memref<18xf32, #tpu.memory_space<smem>>
    %4 = vector.broadcast %3 : f32 to vector<16x128xf32>
    %5 = arith.addf %2, %4 : vector<16x128xf32>
    %c1_i32 = arith.constant 1 : i32
    %6 = vector.broadcast %c1_i32 : i32 to vector<16x128xi32>
    %7 = arith.cmpi eq, %1, %6 : vector<16x128xi32>
    %c9 = arith.constant 9 : index
    %8 = memref.load %arg1[%c9] : memref<18xf32, #tpu.memory_space<smem>>
    %9 = vector.broadcast %8 : f32 to vector<16x128xf32>
    %10 = arith.select %7, %9, %5 : vector<16x128xi1>, vector<16x128xf32>
    %cst_3 = arith.constant 0.000000e+00 : f32
    %11 = vector.broadcast %cst_3 : f32 to vector<16x128xf32>
    %c1 = arith.constant 1 : index
    %12 = memref.load %arg1[%c1] : memref<18xf32, #tpu.memory_space<smem>>
    %13 = vector.broadcast %12 : f32 to vector<16x128xf32>
    %14 = arith.addf %11, %13 : vector<16x128xf32>
    %c1_i32_4 = arith.constant 1 : i32
    %15 = vector.broadcast %c1_i32_4 : i32 to vector<16x128xi32>
    %16 = arith.cmpi eq, %1, %15 : vector<16x128xi32>
    %c10 = arith.constant 10 : index
    %17 = memref.load %arg1[%c10] : memref<18xf32, #tpu.memory_space<smem>>
    %18 = vector.broadcast %17 : f32 to vector<16x128xf32>
    %19 = arith.select %16, %18, %14 : vector<16x128xi1>, vector<16x128xf32>
    %cst_5 = arith.constant 0.000000e+00 : f32
    %20 = vector.broadcast %cst_5 : f32 to vector<16x128xf32>
    %c2 = arith.constant 2 : index
    %21 = memref.load %arg1[%c2] : memref<18xf32, #tpu.memory_space<smem>>
    %22 = vector.broadcast %21 : f32 to vector<16x128xf32>
    %23 = arith.addf %20, %22 : vector<16x128xf32>
    %c1_i32_6 = arith.constant 1 : i32
    %24 = vector.broadcast %c1_i32_6 : i32 to vector<16x128xi32>
    %25 = arith.cmpi eq, %1, %24 : vector<16x128xi32>
    %c11 = arith.constant 11 : index
    %26 = memref.load %arg1[%c11] : memref<18xf32, #tpu.memory_space<smem>>
    %27 = vector.broadcast %26 : f32 to vector<16x128xf32>
    %28 = arith.select %25, %27, %23 : vector<16x128xi1>, vector<16x128xf32>
    %cst_7 = arith.constant 0.000000e+00 : f32
    %29 = vector.broadcast %cst_7 : f32 to vector<16x128xf32>
    %c3 = arith.constant 3 : index
    %30 = memref.load %arg1[%c3] : memref<18xf32, #tpu.memory_space<smem>>
    %31 = vector.broadcast %30 : f32 to vector<16x128xf32>
    %32 = arith.addf %29, %31 : vector<16x128xf32>
    %c1_i32_8 = arith.constant 1 : i32
    %33 = vector.broadcast %c1_i32_8 : i32 to vector<16x128xi32>
    %34 = arith.cmpi eq, %1, %33 : vector<16x128xi32>
    %c12 = arith.constant 12 : index
    %35 = memref.load %arg1[%c12] : memref<18xf32, #tpu.memory_space<smem>>
    %36 = vector.broadcast %35 : f32 to vector<16x128xf32>
    %37 = arith.select %34, %36, %32 : vector<16x128xi1>, vector<16x128xf32>
    %cst_9 = arith.constant 0.000000e+00 : f32
    %38 = vector.broadcast %cst_9 : f32 to vector<16x128xf32>
    %c4 = arith.constant 4 : index
    %39 = memref.load %arg1[%c4] : memref<18xf32, #tpu.memory_space<smem>>
    %40 = vector.broadcast %39 : f32 to vector<16x128xf32>
    %41 = arith.addf %38, %40 : vector<16x128xf32>
    %c1_i32_10 = arith.constant 1 : i32
    %42 = vector.broadcast %c1_i32_10 : i32 to vector<16x128xi32>
    %43 = arith.cmpi eq, %1, %42 : vector<16x128xi32>
    %c13 = arith.constant 13 : index
    %44 = memref.load %arg1[%c13] : memref<18xf32, #tpu.memory_space<smem>>
    %45 = vector.broadcast %44 : f32 to vector<16x128xf32>
    %46 = arith.select %43, %45, %41 : vector<16x128xi1>, vector<16x128xf32>
    %cst_11 = arith.constant 0.000000e+00 : f32
    %47 = vector.broadcast %cst_11 : f32 to vector<16x128xf32>
    %c5 = arith.constant 5 : index
    %48 = memref.load %arg1[%c5] : memref<18xf32, #tpu.memory_space<smem>>
    %49 = vector.broadcast %48 : f32 to vector<16x128xf32>
    %50 = arith.addf %47, %49 : vector<16x128xf32>
    %c1_i32_12 = arith.constant 1 : i32
    %51 = vector.broadcast %c1_i32_12 : i32 to vector<16x128xi32>
    %52 = arith.cmpi eq, %1, %51 : vector<16x128xi32>
    %c14 = arith.constant 14 : index
    %53 = memref.load %arg1[%c14] : memref<18xf32, #tpu.memory_space<smem>>
    %54 = vector.broadcast %53 : f32 to vector<16x128xf32>
    %55 = arith.select %52, %54, %50 : vector<16x128xi1>, vector<16x128xf32>
    %cst_13 = arith.constant 0.000000e+00 : f32
    %56 = vector.broadcast %cst_13 : f32 to vector<16x128xf32>
    %c6 = arith.constant 6 : index
    %57 = memref.load %arg1[%c6] : memref<18xf32, #tpu.memory_space<smem>>
    %58 = vector.broadcast %57 : f32 to vector<16x128xf32>
    %59 = arith.addf %56, %58 : vector<16x128xf32>
    %c1_i32_14 = arith.constant 1 : i32
    %60 = vector.broadcast %c1_i32_14 : i32 to vector<16x128xi32>
    %61 = arith.cmpi eq, %1, %60 : vector<16x128xi32>
    %c15 = arith.constant 15 : index
    %62 = memref.load %arg1[%c15] : memref<18xf32, #tpu.memory_space<smem>>
    %63 = vector.broadcast %62 : f32 to vector<16x128xf32>
    %64 = arith.select %61, %63, %59 : vector<16x128xi1>, vector<16x128xf32>
    %cst_15 = arith.constant 0.000000e+00 : f32
    %65 = vector.broadcast %cst_15 : f32 to vector<16x128xf32>
    %c7 = arith.constant 7 : index
    %66 = memref.load %arg1[%c7] : memref<18xf32, #tpu.memory_space<smem>>
    %67 = vector.broadcast %66 : f32 to vector<16x128xf32>
    %68 = arith.addf %65, %67 : vector<16x128xf32>
    %c1_i32_16 = arith.constant 1 : i32
    %69 = vector.broadcast %c1_i32_16 : i32 to vector<16x128xi32>
    %70 = arith.cmpi eq, %1, %69 : vector<16x128xi32>
    %c16 = arith.constant 16 : index
    %71 = memref.load %arg1[%c16] : memref<18xf32, #tpu.memory_space<smem>>
    %72 = vector.broadcast %71 : f32 to vector<16x128xf32>
    %73 = arith.select %70, %72, %68 : vector<16x128xi1>, vector<16x128xf32>
    %cst_17 = arith.constant 0.000000e+00 : f32
    %74 = vector.broadcast %cst_17 : f32 to vector<16x128xf32>
    %c8 = arith.constant 8 : index
    %75 = memref.load %arg1[%c8] : memref<18xf32, #tpu.memory_space<smem>>
    %76 = vector.broadcast %75 : f32 to vector<16x128xf32>
    %77 = arith.addf %74, %76 : vector<16x128xf32>
    %c1_i32_18 = arith.constant 1 : i32
    %78 = vector.broadcast %c1_i32_18 : i32 to vector<16x128xi32>
    %79 = arith.cmpi eq, %1, %78 : vector<16x128xi32>
    %c17 = arith.constant 17 : index
    %80 = memref.load %arg1[%c17] : memref<18xf32, #tpu.memory_space<smem>>
    %81 = vector.broadcast %80 : f32 to vector<16x128xf32>
    %82 = arith.select %79, %81, %77 : vector<16x128xi1>, vector<16x128xf32>
    %c0_19 = arith.constant 0 : index
    %c0_20 = arith.constant 0 : index
    %c0_21 = arith.constant 0 : index
    %83 = vector.load %arg3[%c0_19, %c0_20, %c0_21] : memref<3x16x128xf32, #tpu.memory_space<vmem>>, vector<1x16x128xf32>
    %84 = vector.shape_cast %83 : vector<1x16x128xf32> to vector<16x128xf32>
    %c1_22 = arith.constant 1 : index
    %c0_23 = arith.constant 0 : index
    %c0_24 = arith.constant 0 : index
    %85 = vector.load %arg3[%c1_22, %c0_23, %c0_24] : memref<3x16x128xf32, #tpu.memory_space<vmem>>, vector<1x16x128xf32>
    %86 = vector.shape_cast %85 : vector<1x16x128xf32> to vector<16x128xf32>
    %c2_25 = arith.constant 2 : index
    %c0_26 = arith.constant 0 : index
    %c0_27 = arith.constant 0 : index
    %87 = vector.load %arg3[%c2_25, %c0_26, %c0_27] : memref<3x16x128xf32, #tpu.memory_space<vmem>>, vector<1x16x128xf32>
    %88 = vector.shape_cast %87 : vector<1x16x128xf32> to vector<16x128xf32>
    %89 = arith.mulf %84, %10 : vector<16x128xf32>
    %cst_28 = arith.constant 0.000000e+00 : f32
    %90 = vector.broadcast %cst_28 : f32 to vector<16x128xf32>
    %91 = arith.addf %90, %89 : vector<16x128xf32>
    %92 = arith.mulf %86, %37 : vector<16x128xf32>
    %93 = arith.addf %91, %92 : vector<16x128xf32>
    %94 = arith.mulf %88, %64 : vector<16x128xf32>
    %95 = arith.addf %93, %94 : vector<16x128xf32>
    %96 = arith.mulf %84, %19 : vector<16x128xf32>
    %cst_29 = arith.constant 0.000000e+00 : f32
    %97 = vector.broadcast %cst_29 : f32 to vector<16x128xf32>
    %98 = arith.addf %97, %96 : vector<16x128xf32>
    %99 = arith.mulf %86, %46 : vector<16x128xf32>
    %100 = arith.addf %98, %99 : vector<16x128xf32>
    %101 = arith.mulf %88, %73 : vector<16x128xf32>
    %102 = arith.addf %100, %101 : vector<16x128xf32>
    %103 = arith.mulf %84, %28 : vector<16x128xf32>
    %cst_30 = arith.constant 0.000000e+00 : f32
    %104 = vector.broadcast %cst_30 : f32 to vector<16x128xf32>
    %105 = arith.addf %104, %103 : vector<16x128xf32>
    %106 = arith.mulf %86, %55 : vector<16x128xf32>
    %107 = arith.addf %105, %106 : vector<16x128xf32>
    %108 = arith.mulf %88, %82 : vector<16x128xf32>
    %109 = arith.addf %107, %108 : vector<16x128xf32>
    %110 = arith.mulf %95, %95 : vector<16x128xf32>
    %111 = arith.mulf %102, %102 : vector<16x128xf32>
    %112 = arith.addf %110, %111 : vector<16x128xf32>
    %113 = arith.mulf %109, %109 : vector<16x128xf32>
    %114 = arith.addf %112, %113 : vector<16x128xf32>
    %cst_31 = arith.constant 1.000000e-24 : f32
    %115 = vector.broadcast %cst_31 : f32 to vector<16x128xf32>
    %116 = arith.maximumf %114, %115 : vector<16x128xf32>
    %117 = math.rsqrt %116 : vector<16x128xf32>
    %118 = arith.mulf %84, %95 : vector<16x128xf32>
    %119 = arith.mulf %118, %117 : vector<16x128xf32>
    %120 = arith.mulf %84, %102 : vector<16x128xf32>
    %121 = arith.mulf %120, %117 : vector<16x128xf32>
    %122 = arith.mulf %84, %109 : vector<16x128xf32>
    %123 = arith.mulf %122, %117 : vector<16x128xf32>
    %124 = arith.mulf %86, %95 : vector<16x128xf32>
    %125 = arith.mulf %124, %117 : vector<16x128xf32>
    %126 = arith.mulf %86, %102 : vector<16x128xf32>
    %127 = arith.mulf %126, %117 : vector<16x128xf32>
    %128 = arith.mulf %86, %109 : vector<16x128xf32>
    %129 = arith.mulf %128, %117 : vector<16x128xf32>
    %130 = arith.mulf %88, %95 : vector<16x128xf32>
    %131 = arith.mulf %130, %117 : vector<16x128xf32>
    %132 = arith.mulf %88, %102 : vector<16x128xf32>
    %133 = arith.mulf %132, %117 : vector<16x128xf32>
    %134 = arith.mulf %88, %109 : vector<16x128xf32>
    %135 = arith.mulf %134, %117 : vector<16x128xf32>
    %c0_32 = arith.constant 0 : index
    %c0_33 = arith.constant 0 : index
    %c0_34 = arith.constant 0 : index
    %136 = vector.load %arg4[%c0_32, %c0_33, %c0_34] : memref<18x16x128xf32, #tpu.memory_space<vmem>>, vector<1x16x128xf32>
    %137 = vector.shape_cast %136 : vector<1x16x128xf32> to vector<16x128xf32>
    %138 = vector.shape_cast %119 : vector<16x128xf32> to vector<1x16x128xf32>
    tpu.vector_store %arg4[%c0_32, %c0_33, %c0_34], %138 {strides = array<i32>} : memref<18x16x128xf32, #tpu.memory_space<vmem>>, vector<1x16x128xf32>,
    %c1_35 = arith.constant 1 : index
    %c0_36 = arith.constant 0 : index
    %c0_37 = arith.constant 0 : index
    %139 = vector.load %arg4[%c1_35, %c0_36, %c0_37] : memref<18x16x128xf32, #tpu.memory_space<vmem>>, vector<1x16x128xf32>
    %140 = vector.shape_cast %139 : vector<1x16x128xf32> to vector<16x128xf32>
    %141 = vector.shape_cast %121 : vector<16x128xf32> to vector<1x16x128xf32>
    tpu.vector_store %arg4[%c1_35, %c0_36, %c0_37], %141 {strides = array<i32>} : memref<18x16x128xf32, #tpu.memory_space<vmem>>, vector<1x16x128xf32>,
    %c2_38 = arith.constant 2 : index
    %c0_39 = arith.constant 0 : index
    %c0_40 = arith.constant 0 : index
    %142 = vector.load %arg4[%c2_38, %c0_39, %c0_40] : memref<18x16x128xf32, #tpu.memory_space<vmem>>, vector<1x16x128xf32>
    %143 = vector.shape_cast %142 : vector<1x16x128xf32> to vector<16x128xf32>
    %144 = vector.shape_cast %123 : vector<16x128xf32> to vector<1x16x128xf32>
    tpu.vector_store %arg4[%c2_38, %c0_39, %c0_40], %144 {strides = array<i32>} : memref<18x16x128xf32, #tpu.memory_space<vmem>>, vector<1x16x128xf32>,
    %c3_41 = arith.constant 3 : index
    %c0_42 = arith.constant 0 : index
    %c0_43 = arith.constant 0 : index
    %145 = vector.load %arg4[%c3_41, %c0_42, %c0_43] : memref<18x16x128xf32, #tpu.memory_space<vmem>>, vector<1x16x128xf32>
    %146 = vector.shape_cast %145 : vector<1x16x128xf32> to vector<16x128xf32>
    %147 = vector.shape_cast %125 : vector<16x128xf32> to vector<1x16x128xf32>
    tpu.vector_store %arg4[%c3_41, %c0_42, %c0_43], %147 {strides = array<i32>} : memref<18x16x128xf32, #tpu.memory_space<vmem>>, vector<1x16x128xf32>,
    %c4_44 = arith.constant 4 : index
    %c0_45 = arith.constant 0 : index
    %c0_46 = arith.constant 0 : index
    %148 = vector.load %arg4[%c4_44, %c0_45, %c0_46] : memref<18x16x128xf32, #tpu.memory_space<vmem>>, vector<1x16x128xf32>
    %149 = vector.shape_cast %148 : vector<1x16x128xf32> to vector<16x128xf32>
    %150 = vector.shape_cast %127 : vector<16x128xf32> to vector<1x16x128xf32>
    tpu.vector_store %arg4[%c4_44, %c0_45, %c0_46], %150 {strides = array<i32>} : memref<18x16x128xf32, #tpu.memory_space<vmem>>, vector<1x16x128xf32>,
    %c5_47 = arith.constant 5 : index
    %c0_48 = arith.constant 0 : index
    %c0_49 = arith.constant 0 : index
    %151 = vector.load %arg4[%c5_47, %c0_48, %c0_49] : memref<18x16x128xf32, #tpu.memory_space<vmem>>, vector<1x16x128xf32>
    %152 = vector.shape_cast %151 : vector<1x16x128xf32> to vector<16x128xf32>
    %153 = vector.shape_cast %129 : vector<16x128xf32> to vector<1x16x128xf32>
    tpu.vector_store %arg4[%c5_47, %c0_48, %c0_49], %153 {strides = array<i32>} : memref<18x16x128xf32, #tpu.memory_space<vmem>>, vector<1x16x128xf32>,
    %c6_50 = arith.constant 6 : index
    %c0_51 = arith.constant 0 : index
    %c0_52 = arith.constant 0 : index
    %154 = vector.load %arg4[%c6_50, %c0_51, %c0_52] : memref<18x16x128xf32, #tpu.memory_space<vmem>>, vector<1x16x128xf32>
    %155 = vector.shape_cast %154 : vector<1x16x128xf32> to vector<16x128xf32>
    %156 = vector.shape_cast %131 : vector<16x128xf32> to vector<1x16x128xf32>
    tpu.vector_store %arg4[%c6_50, %c0_51, %c0_52], %156 {strides = array<i32>} : memref<18x16x128xf32, #tpu.memory_space<vmem>>, vector<1x16x128xf32>,
    %c7_53 = arith.constant 7 : index
    %c0_54 = arith.constant 0 : index
    %c0_55 = arith.constant 0 : index
    %157 = vector.load %arg4[%c7_53, %c0_54, %c0_55] : memref<18x16x128xf32, #tpu.memory_space<vmem>>, vector<1x16x128xf32>
    %158 = vector.shape_cast %157 : vector<1x16x128xf32> to vector<16x128xf32>
    %159 = vector.shape_cast %133 : vector<16x128xf32> to vector<1x16x128xf32>
    tpu.vector_store %arg4[%c7_53, %c0_54, %c0_55], %159 {strides = array<i32>} : memref<18x16x128xf32, #tpu.memory_space<vmem>>, vector<1x16x128xf32>,
    %c8_56 = arith.constant 8 : index
    %c0_57 = arith.constant 0 : index
    %c0_58 = arith.constant 0 : index
    %160 = vector.load %arg4[%c8_56, %c0_57, %c0_58] : memref<18x16x128xf32, #tpu.memory_space<vmem>>, vector<1x16x128xf32>
    %161 = vector.shape_cast %160 : vector<1x16x128xf32> to vector<16x128xf32>
    %162 = vector.shape_cast %135 : vector<16x128xf32> to vector<1x16x128xf32>
    tpu.vector_store %arg4[%c8_56, %c0_57, %c0_58], %162 {strides = array<i32>} : memref<18x16x128xf32, #tpu.memory_space<vmem>>, vector<1x16x128xf32>,
    %163 = arith.addf %119, %119 : vector<16x128xf32>
    %cst_59 = arith.constant 5.000000e-01 : f32
    %164 = vector.broadcast %cst_59 : f32 to vector<16x128xf32>
    %165 = arith.mulf %164, %163 : vector<16x128xf32>
    %166 = arith.addf %121, %125 : vector<16x128xf32>
    %cst_60 = arith.constant 5.000000e-01 : f32
    %167 = vector.broadcast %cst_60 : f32 to vector<16x128xf32>
    %168 = arith.mulf %167, %166 : vector<16x128xf32>
    %169 = arith.addf %123, %131 : vector<16x128xf32>
    %cst_61 = arith.constant 5.000000e-01 : f32
    %170 = vector.broadcast %cst_61 : f32 to vector<16x128xf32>
    %171 = arith.mulf %170, %169 : vector<16x128xf32>
    %172 = arith.addf %125, %121 : vector<16x128xf32>
    %cst_62 = arith.constant 5.000000e-01 : f32
    %173 = vector.broadcast %cst_62 : f32 to vector<16x128xf32>
    %174 = arith.mulf %173, %172 : vector<16x128xf32>
    %175 = arith.addf %127, %127 : vector<16x128xf32>
    %cst_63 = arith.constant 5.000000e-01 : f32
    %176 = vector.broadcast %cst_63 : f32 to vector<16x128xf32>
    %177 = arith.mulf %176, %175 : vector<16x128xf32>
    %178 = arith.addf %129, %133 : vector<16x128xf32>
    %cst_64 = arith.constant 5.000000e-01 : f32
    %179 = vector.broadcast %cst_64 : f32 to vector<16x128xf32>
    %180 = arith.mulf %179, %178 : vector<16x128xf32>
    %181 = arith.addf %131, %123 : vector<16x128xf32>
    %cst_65 = arith.constant 5.000000e-01 : f32
    %182 = vector.broadcast %cst_65 : f32 to vector<16x128xf32>
    %183 = arith.mulf %182, %181 : vector<16x128xf32>
    %184 = arith.addf %133, %129 : vector<16x128xf32>
    %cst_66 = arith.constant 5.000000e-01 : f32
    %185 = vector.broadcast %cst_66 : f32 to vector<16x128xf32>
    %186 = arith.mulf %185, %184 : vector<16x128xf32>
    %187 = arith.addf %135, %135 : vector<16x128xf32>
    %cst_67 = arith.constant 5.000000e-01 : f32
    %188 = vector.broadcast %cst_67 : f32 to vector<16x128xf32>
    %189 = arith.mulf %188, %187 : vector<16x128xf32>
    %c9_68 = arith.constant 9 : index
    %c0_69 = arith.constant 0 : index
    %c0_70 = arith.constant 0 : index
    %190 = vector.load %arg4[%c9_68, %c0_69, %c0_70] : memref<18x16x128xf32, #tpu.memory_space<vmem>>, vector<1x16x128xf32>
    %191 = vector.shape_cast %190 : vector<1x16x128xf32> to vector<16x128xf32>
    %192 = vector.shape_cast %165 : vector<16x128xf32> to vector<1x16x128xf32>
    tpu.vector_store %arg4[%c9_68, %c0_69, %c0_70], %192 {strides = array<i32>} : memref<18x16x128xf32, #tpu.memory_space<vmem>>, vector<1x16x128xf32>,
    %c10_71 = arith.constant 10 : index
    %c0_72 = arith.constant 0 : index
    %c0_73 = arith.constant 0 : index
    %193 = vector.load %arg4[%c10_71, %c0_72, %c0_73] : memref<18x16x128xf32, #tpu.memory_space<vmem>>, vector<1x16x128xf32>
    %194 = vector.shape_cast %193 : vector<1x16x128xf32> to vector<16x128xf32>
    %195 = vector.shape_cast %168 : vector<16x128xf32> to vector<1x16x128xf32>
    tpu.vector_store %arg4[%c10_71, %c0_72, %c0_73], %195 {strides = array<i32>} : memref<18x16x128xf32, #tpu.memory_space<vmem>>, vector<1x16x128xf32>,
    %c11_74 = arith.constant 11 : index
    %c0_75 = arith.constant 0 : index
    %c0_76 = arith.constant 0 : index
    %196 = vector.load %arg4[%c11_74, %c0_75, %c0_76] : memref<18x16x128xf32, #tpu.memory_space<vmem>>, vector<1x16x128xf32>
    %197 = vector.shape_cast %196 : vector<1x16x128xf32> to vector<16x128xf32>
    %198 = vector.shape_cast %171 : vector<16x128xf32> to vector<1x16x128xf32>
    tpu.vector_store %arg4[%c11_74, %c0_75, %c0_76], %198 {strides = array<i32>} : memref<18x16x128xf32, #tpu.memory_space<vmem>>, vector<1x16x128xf32>,
    %c12_77 = arith.constant 12 : index
    %c0_78 = arith.constant 0 : index
    %c0_79 = arith.constant 0 : index
    %199 = vector.load %arg4[%c12_77, %c0_78, %c0_79] : memref<18x16x128xf32, #tpu.memory_space<vmem>>, vector<1x16x128xf32>
    %200 = vector.shape_cast %199 : vector<1x16x128xf32> to vector<16x128xf32>
    %201 = vector.shape_cast %174 : vector<16x128xf32> to vector<1x16x128xf32>
    tpu.vector_store %arg4[%c12_77, %c0_78, %c0_79], %201 {strides = array<i32>} : memref<18x16x128xf32, #tpu.memory_space<vmem>>, vector<1x16x128xf32>,
    %c13_80 = arith.constant 13 : index
    %c0_81 = arith.constant 0 : index
    %c0_82 = arith.constant 0 : index
    %202 = vector.load %arg4[%c13_80, %c0_81, %c0_82] : memref<18x16x128xf32, #tpu.memory_space<vmem>>, vector<1x16x128xf32>
    %203 = vector.shape_cast %202 : vector<1x16x128xf32> to vector<16x128xf32>
    %204 = vector.shape_cast %177 : vector<16x128xf32> to vector<1x16x128xf32>
    tpu.vector_store %arg4[%c13_80, %c0_81, %c0_82], %204 {strides = array<i32>} : memref<18x16x128xf32, #tpu.memory_space<vmem>>, vector<1x16x128xf32>,
    %c14_83 = arith.constant 14 : index
    %c0_84 = arith.constant 0 : index
    %c0_85 = arith.constant 0 : index
    %205 = vector.load %arg4[%c14_83, %c0_84, %c0_85] : memref<18x16x128xf32, #tpu.memory_space<vmem>>, vector<1x16x128xf32>
    %206 = vector.shape_cast %205 : vector<1x16x128xf32> to vector<16x128xf32>
    %207 = vector.shape_cast %180 : vector<16x128xf32> to vector<1x16x128xf32>
    tpu.vector_store %arg4[%c14_83, %c0_84, %c0_85], %207 {strides = array<i32>} : memref<18x16x128xf32, #tpu.memory_space<vmem>>, vector<1x16x128xf32>,
    %c15_86 = arith.constant 15 : index
    %c0_87 = arith.constant 0 : index
    %c0_88 = arith.constant 0 : index
    %208 = vector.load %arg4[%c15_86, %c0_87, %c0_88] : memref<18x16x128xf32, #tpu.memory_space<vmem>>, vector<1x16x128xf32>
    %209 = vector.shape_cast %208 : vector<1x16x128xf32> to vector<16x128xf32>
    %210 = vector.shape_cast %183 : vector<16x128xf32> to vector<1x16x128xf32>
    tpu.vector_store %arg4[%c15_86, %c0_87, %c0_88], %210 {strides = array<i32>} : memref<18x16x128xf32, #tpu.memory_space<vmem>>, vector<1x16x128xf32>,
    %c16_89 = arith.constant 16 : index
    %c0_90 = arith.constant 0 : index
    %c0_91 = arith.constant 0 : index
    %211 = vector.load %arg4[%c16_89, %c0_90, %c0_91] : memref<18x16x128xf32, #tpu.memory_space<vmem>>, vector<1x16x128xf32>
    %212 = vector.shape_cast %211 : vector<1x16x128xf32> to vector<16x128xf32>
    %213 = vector.shape_cast %186 : vector<16x128xf32> to vector<1x16x128xf32>
    tpu.vector_store %arg4[%c16_89, %c0_90, %c0_91], %213 {strides = array<i32>} : memref<18x16x128xf32, #tpu.memory_space<vmem>>, vector<1x16x128xf32>,
    %c17_92 = arith.constant 17 : index
    %c0_93 = arith.constant 0 : index
    %c0_94 = arith.constant 0 : index
    %214 = vector.load %arg4[%c17_92, %c0_93, %c0_94] : memref<18x16x128xf32, #tpu.memory_space<vmem>>, vector<1x16x128xf32>
    %215 = vector.shape_cast %214 : vector<1x16x128xf32> to vector<16x128xf32>
    %216 = vector.shape_cast %189 : vector<16x128xf32> to vector<1x16x128xf32>
    tpu.vector_store %arg4[%c17_92, %c0_93, %c0_94], %216 {strides = array<i32>} : memref<18x16x128xf32, #tpu.memory_space<vmem>>, vector<1x16x128xf32>,
    return
  }
  func.func @transform_0(%arg0: i32) -> i32 {
    %c0_i32 = arith.constant 0 : i32
    %c0_i32_0 = arith.constant 0 : i32
    return %c0_i32 : i32
  }
  func.func @transform_1(%arg0: i32) -> (i32, i32, i32) {
    %c0_i32 = arith.constant 0 : i32
    %c0_i32_0 = arith.constant 0 : i32
    %c0_i32_1 = arith.constant 0 : i32
    return %c0_i32, %arg0, %c0_i32_0 : i32, i32, i32
  }
  func.func @transform_2(%arg0: i32) -> (i32, i32, i32) {
    %c0_i32 = arith.constant 0 : i32
    %c0_i32_0 = arith.constant 0 : i32
    %c0_i32_1 = arith.constant 0 : i32
    return %c0_i32, %arg0, %c0_i32_0 : i32, i32, i32
  }
  func.func @transform_3(%arg0: i32) -> (i32, i32, i32) {
    %c0_i32 = arith.constant 0 : i32
    %c0_i32_0 = arith.constant 0 : i32
    %c0_i32_1 = arith.constant 0 : i32
    return %c0_i32, %arg0, %c0_i32_0 : i32, i32, i32
  }
}

module attributes {stable_mosaic.version = 11 : i64} {
  func.func @kernel(%arg0: i32, %arg1: memref<18xf32, #tpu.memory_space<smem>>, %arg2: memref<1x16x128xi32, #tpu.memory_space<vmem>>, %arg3: memref<3x16x128xf32, #tpu.memory_space<vmem>>, %arg4: memref<3x16x128xf32, #tpu.memory_space<vmem>>, %arg5: memref<36x16x128xf32, #tpu.memory_space<vmem>>) attributes {dimension_semantics = [#tpu.dimension_semantics<parallel>], iteration_bounds = array<i64: 1>, scalar_prefetch = 0 : i64, scratch_operands = 0 : i64, tpu.core_type = #tpu.core_type<tc>, window_params = [{transform_indices = @transform_0, window_bounds = array<i64: 18>}, {transform_indices = @transform_1, window_bounds = array<i64: 1, 16, 128>}, {transform_indices = @transform_2, window_bounds = array<i64: 3, 16, 128>}, {transform_indices = @transform_3, window_bounds = array<i64: 3, 16, 128>}, {transform_indices = @transform_4, window_bounds = array<i64: 36, 16, 128>}]} {
    %c0 = arith.constant 0 : index
    %c0_0 = arith.constant 0 : index
    %c0_1 = arith.constant 0 : index
    %0 = vector.load %arg2[%c0, %c0_0, %c0_1] : memref<1x16x128xi32, #tpu.memory_space<vmem>>, vector<1x16x128xi32>
    %1 = vector.shape_cast %0 : vector<1x16x128xi32> to vector<16x128xi32>
    %cst = arith.constant 0.000000e+00 : f32
    %2 = vector.broadcast %cst : f32 to vector<16x128xf32>
    %c0_2 = arith.constant 0 : index
    %3 = memref.load %arg1[%c0_2] : memref<18xf32, #tpu.memory_space<smem>>
    %4 = vector.broadcast %3 : f32 to vector<16x128xf32>
    %5 = arith.addf %2, %4 : vector<16x128xf32>
    %c1_i32 = arith.constant 1 : i32
    %6 = vector.broadcast %c1_i32 : i32 to vector<16x128xi32>
    %7 = arith.cmpi eq, %1, %6 : vector<16x128xi32>
    %c9 = arith.constant 9 : index
    %8 = memref.load %arg1[%c9] : memref<18xf32, #tpu.memory_space<smem>>
    %9 = vector.broadcast %8 : f32 to vector<16x128xf32>
    %10 = arith.select %7, %9, %5 : vector<16x128xi1>, vector<16x128xf32>
    %cst_3 = arith.constant 0.000000e+00 : f32
    %11 = vector.broadcast %cst_3 : f32 to vector<16x128xf32>
    %c1 = arith.constant 1 : index
    %12 = memref.load %arg1[%c1] : memref<18xf32, #tpu.memory_space<smem>>
    %13 = vector.broadcast %12 : f32 to vector<16x128xf32>
    %14 = arith.addf %11, %13 : vector<16x128xf32>
    %c1_i32_4 = arith.constant 1 : i32
    %15 = vector.broadcast %c1_i32_4 : i32 to vector<16x128xi32>
    %16 = arith.cmpi eq, %1, %15 : vector<16x128xi32>
    %c10 = arith.constant 10 : index
    %17 = memref.load %arg1[%c10] : memref<18xf32, #tpu.memory_space<smem>>
    %18 = vector.broadcast %17 : f32 to vector<16x128xf32>
    %19 = arith.select %16, %18, %14 : vector<16x128xi1>, vector<16x128xf32>
    %cst_5 = arith.constant 0.000000e+00 : f32
    %20 = vector.broadcast %cst_5 : f32 to vector<16x128xf32>
    %c2 = arith.constant 2 : index
    %21 = memref.load %arg1[%c2] : memref<18xf32, #tpu.memory_space<smem>>
    %22 = vector.broadcast %21 : f32 to vector<16x128xf32>
    %23 = arith.addf %20, %22 : vector<16x128xf32>
    %c1_i32_6 = arith.constant 1 : i32
    %24 = vector.broadcast %c1_i32_6 : i32 to vector<16x128xi32>
    %25 = arith.cmpi eq, %1, %24 : vector<16x128xi32>
    %c11 = arith.constant 11 : index
    %26 = memref.load %arg1[%c11] : memref<18xf32, #tpu.memory_space<smem>>
    %27 = vector.broadcast %26 : f32 to vector<16x128xf32>
    %28 = arith.select %25, %27, %23 : vector<16x128xi1>, vector<16x128xf32>
    %cst_7 = arith.constant 0.000000e+00 : f32
    %29 = vector.broadcast %cst_7 : f32 to vector<16x128xf32>
    %c3 = arith.constant 3 : index
    %30 = memref.load %arg1[%c3] : memref<18xf32, #tpu.memory_space<smem>>
    %31 = vector.broadcast %30 : f32 to vector<16x128xf32>
    %32 = arith.addf %29, %31 : vector<16x128xf32>
    %c1_i32_8 = arith.constant 1 : i32
    %33 = vector.broadcast %c1_i32_8 : i32 to vector<16x128xi32>
    %34 = arith.cmpi eq, %1, %33 : vector<16x128xi32>
    %c12 = arith.constant 12 : index
    %35 = memref.load %arg1[%c12] : memref<18xf32, #tpu.memory_space<smem>>
    %36 = vector.broadcast %35 : f32 to vector<16x128xf32>
    %37 = arith.select %34, %36, %32 : vector<16x128xi1>, vector<16x128xf32>
    %cst_9 = arith.constant 0.000000e+00 : f32
    %38 = vector.broadcast %cst_9 : f32 to vector<16x128xf32>
    %c4 = arith.constant 4 : index
    %39 = memref.load %arg1[%c4] : memref<18xf32, #tpu.memory_space<smem>>
    %40 = vector.broadcast %39 : f32 to vector<16x128xf32>
    %41 = arith.addf %38, %40 : vector<16x128xf32>
    %c1_i32_10 = arith.constant 1 : i32
    %42 = vector.broadcast %c1_i32_10 : i32 to vector<16x128xi32>
    %43 = arith.cmpi eq, %1, %42 : vector<16x128xi32>
    %c13 = arith.constant 13 : index
    %44 = memref.load %arg1[%c13] : memref<18xf32, #tpu.memory_space<smem>>
    %45 = vector.broadcast %44 : f32 to vector<16x128xf32>
    %46 = arith.select %43, %45, %41 : vector<16x128xi1>, vector<16x128xf32>
    %cst_11 = arith.constant 0.000000e+00 : f32
    %47 = vector.broadcast %cst_11 : f32 to vector<16x128xf32>
    %c5 = arith.constant 5 : index
    %48 = memref.load %arg1[%c5] : memref<18xf32, #tpu.memory_space<smem>>
    %49 = vector.broadcast %48 : f32 to vector<16x128xf32>
    %50 = arith.addf %47, %49 : vector<16x128xf32>
    %c1_i32_12 = arith.constant 1 : i32
    %51 = vector.broadcast %c1_i32_12 : i32 to vector<16x128xi32>
    %52 = arith.cmpi eq, %1, %51 : vector<16x128xi32>
    %c14 = arith.constant 14 : index
    %53 = memref.load %arg1[%c14] : memref<18xf32, #tpu.memory_space<smem>>
    %54 = vector.broadcast %53 : f32 to vector<16x128xf32>
    %55 = arith.select %52, %54, %50 : vector<16x128xi1>, vector<16x128xf32>
    %cst_13 = arith.constant 0.000000e+00 : f32
    %56 = vector.broadcast %cst_13 : f32 to vector<16x128xf32>
    %c6 = arith.constant 6 : index
    %57 = memref.load %arg1[%c6] : memref<18xf32, #tpu.memory_space<smem>>
    %58 = vector.broadcast %57 : f32 to vector<16x128xf32>
    %59 = arith.addf %56, %58 : vector<16x128xf32>
    %c1_i32_14 = arith.constant 1 : i32
    %60 = vector.broadcast %c1_i32_14 : i32 to vector<16x128xi32>
    %61 = arith.cmpi eq, %1, %60 : vector<16x128xi32>
    %c15 = arith.constant 15 : index
    %62 = memref.load %arg1[%c15] : memref<18xf32, #tpu.memory_space<smem>>
    %63 = vector.broadcast %62 : f32 to vector<16x128xf32>
    %64 = arith.select %61, %63, %59 : vector<16x128xi1>, vector<16x128xf32>
    %cst_15 = arith.constant 0.000000e+00 : f32
    %65 = vector.broadcast %cst_15 : f32 to vector<16x128xf32>
    %c7 = arith.constant 7 : index
    %66 = memref.load %arg1[%c7] : memref<18xf32, #tpu.memory_space<smem>>
    %67 = vector.broadcast %66 : f32 to vector<16x128xf32>
    %68 = arith.addf %65, %67 : vector<16x128xf32>
    %c1_i32_16 = arith.constant 1 : i32
    %69 = vector.broadcast %c1_i32_16 : i32 to vector<16x128xi32>
    %70 = arith.cmpi eq, %1, %69 : vector<16x128xi32>
    %c16 = arith.constant 16 : index
    %71 = memref.load %arg1[%c16] : memref<18xf32, #tpu.memory_space<smem>>
    %72 = vector.broadcast %71 : f32 to vector<16x128xf32>
    %73 = arith.select %70, %72, %68 : vector<16x128xi1>, vector<16x128xf32>
    %cst_17 = arith.constant 0.000000e+00 : f32
    %74 = vector.broadcast %cst_17 : f32 to vector<16x128xf32>
    %c8 = arith.constant 8 : index
    %75 = memref.load %arg1[%c8] : memref<18xf32, #tpu.memory_space<smem>>
    %76 = vector.broadcast %75 : f32 to vector<16x128xf32>
    %77 = arith.addf %74, %76 : vector<16x128xf32>
    %c1_i32_18 = arith.constant 1 : i32
    %78 = vector.broadcast %c1_i32_18 : i32 to vector<16x128xi32>
    %79 = arith.cmpi eq, %1, %78 : vector<16x128xi32>
    %c17 = arith.constant 17 : index
    %80 = memref.load %arg1[%c17] : memref<18xf32, #tpu.memory_space<smem>>
    %81 = vector.broadcast %80 : f32 to vector<16x128xf32>
    %82 = arith.select %79, %81, %77 : vector<16x128xi1>, vector<16x128xf32>
    %c0_19 = arith.constant 0 : index
    %c0_20 = arith.constant 0 : index
    %c0_21 = arith.constant 0 : index
    %83 = vector.load %arg3[%c0_19, %c0_20, %c0_21] : memref<3x16x128xf32, #tpu.memory_space<vmem>>, vector<1x16x128xf32>
    %84 = vector.shape_cast %83 : vector<1x16x128xf32> to vector<16x128xf32>
    %c1_22 = arith.constant 1 : index
    %c0_23 = arith.constant 0 : index
    %c0_24 = arith.constant 0 : index
    %85 = vector.load %arg3[%c1_22, %c0_23, %c0_24] : memref<3x16x128xf32, #tpu.memory_space<vmem>>, vector<1x16x128xf32>
    %86 = vector.shape_cast %85 : vector<1x16x128xf32> to vector<16x128xf32>
    %c2_25 = arith.constant 2 : index
    %c0_26 = arith.constant 0 : index
    %c0_27 = arith.constant 0 : index
    %87 = vector.load %arg3[%c2_25, %c0_26, %c0_27] : memref<3x16x128xf32, #tpu.memory_space<vmem>>, vector<1x16x128xf32>
    %88 = vector.shape_cast %87 : vector<1x16x128xf32> to vector<16x128xf32>
    %c0_28 = arith.constant 0 : index
    %c0_29 = arith.constant 0 : index
    %c0_30 = arith.constant 0 : index
    %89 = vector.load %arg4[%c0_28, %c0_29, %c0_30] : memref<3x16x128xf32, #tpu.memory_space<vmem>>, vector<1x16x128xf32>
    %90 = vector.shape_cast %89 : vector<1x16x128xf32> to vector<16x128xf32>
    %c1_31 = arith.constant 1 : index
    %c0_32 = arith.constant 0 : index
    %c0_33 = arith.constant 0 : index
    %91 = vector.load %arg4[%c1_31, %c0_32, %c0_33] : memref<3x16x128xf32, #tpu.memory_space<vmem>>, vector<1x16x128xf32>
    %92 = vector.shape_cast %91 : vector<1x16x128xf32> to vector<16x128xf32>
    %c2_34 = arith.constant 2 : index
    %c0_35 = arith.constant 0 : index
    %c0_36 = arith.constant 0 : index
    %93 = vector.load %arg4[%c2_34, %c0_35, %c0_36] : memref<3x16x128xf32, #tpu.memory_space<vmem>>, vector<1x16x128xf32>
    %94 = vector.shape_cast %93 : vector<1x16x128xf32> to vector<16x128xf32>
    %95 = arith.mulf %84, %10 : vector<16x128xf32>
    %cst_37 = arith.constant 0.000000e+00 : f32
    %96 = vector.broadcast %cst_37 : f32 to vector<16x128xf32>
    %97 = arith.addf %96, %95 : vector<16x128xf32>
    %98 = arith.mulf %86, %37 : vector<16x128xf32>
    %99 = arith.addf %97, %98 : vector<16x128xf32>
    %100 = arith.mulf %88, %64 : vector<16x128xf32>
    %101 = arith.addf %99, %100 : vector<16x128xf32>
    %102 = arith.mulf %84, %19 : vector<16x128xf32>
    %cst_38 = arith.constant 0.000000e+00 : f32
    %103 = vector.broadcast %cst_38 : f32 to vector<16x128xf32>
    %104 = arith.addf %103, %102 : vector<16x128xf32>
    %105 = arith.mulf %86, %46 : vector<16x128xf32>
    %106 = arith.addf %104, %105 : vector<16x128xf32>
    %107 = arith.mulf %88, %73 : vector<16x128xf32>
    %108 = arith.addf %106, %107 : vector<16x128xf32>
    %109 = arith.mulf %84, %28 : vector<16x128xf32>
    %cst_39 = arith.constant 0.000000e+00 : f32
    %110 = vector.broadcast %cst_39 : f32 to vector<16x128xf32>
    %111 = arith.addf %110, %109 : vector<16x128xf32>
    %112 = arith.mulf %86, %55 : vector<16x128xf32>
    %113 = arith.addf %111, %112 : vector<16x128xf32>
    %114 = arith.mulf %88, %82 : vector<16x128xf32>
    %115 = arith.addf %113, %114 : vector<16x128xf32>
    %116 = arith.mulf %90, %10 : vector<16x128xf32>
    %cst_40 = arith.constant 0.000000e+00 : f32
    %117 = vector.broadcast %cst_40 : f32 to vector<16x128xf32>
    %118 = arith.addf %117, %116 : vector<16x128xf32>
    %119 = arith.mulf %92, %37 : vector<16x128xf32>
    %120 = arith.addf %118, %119 : vector<16x128xf32>
    %121 = arith.mulf %94, %64 : vector<16x128xf32>
    %122 = arith.addf %120, %121 : vector<16x128xf32>
    %123 = arith.mulf %90, %19 : vector<16x128xf32>
    %cst_41 = arith.constant 0.000000e+00 : f32
    %124 = vector.broadcast %cst_41 : f32 to vector<16x128xf32>
    %125 = arith.addf %124, %123 : vector<16x128xf32>
    %126 = arith.mulf %92, %46 : vector<16x128xf32>
    %127 = arith.addf %125, %126 : vector<16x128xf32>
    %128 = arith.mulf %94, %73 : vector<16x128xf32>
    %129 = arith.addf %127, %128 : vector<16x128xf32>
    %130 = arith.mulf %90, %28 : vector<16x128xf32>
    %cst_42 = arith.constant 0.000000e+00 : f32
    %131 = vector.broadcast %cst_42 : f32 to vector<16x128xf32>
    %132 = arith.addf %131, %130 : vector<16x128xf32>
    %133 = arith.mulf %92, %55 : vector<16x128xf32>
    %134 = arith.addf %132, %133 : vector<16x128xf32>
    %135 = arith.mulf %94, %82 : vector<16x128xf32>
    %136 = arith.addf %134, %135 : vector<16x128xf32>
    %137 = arith.mulf %101, %101 : vector<16x128xf32>
    %138 = arith.mulf %108, %108 : vector<16x128xf32>
    %139 = arith.addf %137, %138 : vector<16x128xf32>
    %140 = arith.mulf %115, %115 : vector<16x128xf32>
    %141 = arith.addf %139, %140 : vector<16x128xf32>
    %cst_43 = arith.constant 1.000000e-24 : f32
    %142 = vector.broadcast %cst_43 : f32 to vector<16x128xf32>
    %143 = arith.maximumf %141, %142 : vector<16x128xf32>
    %144 = math.rsqrt %143 : vector<16x128xf32>
    %145 = arith.mulf %122, %122 : vector<16x128xf32>
    %146 = arith.mulf %129, %129 : vector<16x128xf32>
    %147 = arith.addf %145, %146 : vector<16x128xf32>
    %148 = arith.mulf %136, %136 : vector<16x128xf32>
    %149 = arith.addf %147, %148 : vector<16x128xf32>
    %cst_44 = arith.constant 1.000000e-24 : f32
    %150 = vector.broadcast %cst_44 : f32 to vector<16x128xf32>
    %151 = arith.maximumf %149, %150 : vector<16x128xf32>
    %152 = math.rsqrt %151 : vector<16x128xf32>
    %153 = arith.mulf %84, %101 : vector<16x128xf32>
    %154 = arith.mulf %153, %144 : vector<16x128xf32>
    %155 = arith.mulf %84, %108 : vector<16x128xf32>
    %156 = arith.mulf %155, %144 : vector<16x128xf32>
    %157 = arith.mulf %84, %115 : vector<16x128xf32>
    %158 = arith.mulf %157, %144 : vector<16x128xf32>
    %159 = arith.mulf %86, %101 : vector<16x128xf32>
    %160 = arith.mulf %159, %144 : vector<16x128xf32>
    %161 = arith.mulf %86, %108 : vector<16x128xf32>
    %162 = arith.mulf %161, %144 : vector<16x128xf32>
    %163 = arith.mulf %86, %115 : vector<16x128xf32>
    %164 = arith.mulf %163, %144 : vector<16x128xf32>
    %165 = arith.mulf %88, %101 : vector<16x128xf32>
    %166 = arith.mulf %165, %144 : vector<16x128xf32>
    %167 = arith.mulf %88, %108 : vector<16x128xf32>
    %168 = arith.mulf %167, %144 : vector<16x128xf32>
    %169 = arith.mulf %88, %115 : vector<16x128xf32>
    %170 = arith.mulf %169, %144 : vector<16x128xf32>
    %c0_45 = arith.constant 0 : index
    %c0_46 = arith.constant 0 : index
    %c0_47 = arith.constant 0 : index
    %171 = vector.load %arg5[%c0_45, %c0_46, %c0_47] : memref<36x16x128xf32, #tpu.memory_space<vmem>>, vector<1x16x128xf32>
    %172 = vector.shape_cast %171 : vector<1x16x128xf32> to vector<16x128xf32>
    %173 = vector.shape_cast %154 : vector<16x128xf32> to vector<1x16x128xf32>
    tpu.vector_store %arg5[%c0_45, %c0_46, %c0_47], %173 {strides = array<i32>} : memref<36x16x128xf32, #tpu.memory_space<vmem>>, vector<1x16x128xf32>,
    %c1_48 = arith.constant 1 : index
    %c0_49 = arith.constant 0 : index
    %c0_50 = arith.constant 0 : index
    %174 = vector.load %arg5[%c1_48, %c0_49, %c0_50] : memref<36x16x128xf32, #tpu.memory_space<vmem>>, vector<1x16x128xf32>
    %175 = vector.shape_cast %174 : vector<1x16x128xf32> to vector<16x128xf32>
    %176 = vector.shape_cast %156 : vector<16x128xf32> to vector<1x16x128xf32>
    tpu.vector_store %arg5[%c1_48, %c0_49, %c0_50], %176 {strides = array<i32>} : memref<36x16x128xf32, #tpu.memory_space<vmem>>, vector<1x16x128xf32>,
    %c2_51 = arith.constant 2 : index
    %c0_52 = arith.constant 0 : index
    %c0_53 = arith.constant 0 : index
    %177 = vector.load %arg5[%c2_51, %c0_52, %c0_53] : memref<36x16x128xf32, #tpu.memory_space<vmem>>, vector<1x16x128xf32>
    %178 = vector.shape_cast %177 : vector<1x16x128xf32> to vector<16x128xf32>
    %179 = vector.shape_cast %158 : vector<16x128xf32> to vector<1x16x128xf32>
    tpu.vector_store %arg5[%c2_51, %c0_52, %c0_53], %179 {strides = array<i32>} : memref<36x16x128xf32, #tpu.memory_space<vmem>>, vector<1x16x128xf32>,
    %c3_54 = arith.constant 3 : index
    %c0_55 = arith.constant 0 : index
    %c0_56 = arith.constant 0 : index
    %180 = vector.load %arg5[%c3_54, %c0_55, %c0_56] : memref<36x16x128xf32, #tpu.memory_space<vmem>>, vector<1x16x128xf32>
    %181 = vector.shape_cast %180 : vector<1x16x128xf32> to vector<16x128xf32>
    %182 = vector.shape_cast %160 : vector<16x128xf32> to vector<1x16x128xf32>
    tpu.vector_store %arg5[%c3_54, %c0_55, %c0_56], %182 {strides = array<i32>} : memref<36x16x128xf32, #tpu.memory_space<vmem>>, vector<1x16x128xf32>,
    %c4_57 = arith.constant 4 : index
    %c0_58 = arith.constant 0 : index
    %c0_59 = arith.constant 0 : index
    %183 = vector.load %arg5[%c4_57, %c0_58, %c0_59] : memref<36x16x128xf32, #tpu.memory_space<vmem>>, vector<1x16x128xf32>
    %184 = vector.shape_cast %183 : vector<1x16x128xf32> to vector<16x128xf32>
    %185 = vector.shape_cast %162 : vector<16x128xf32> to vector<1x16x128xf32>
    tpu.vector_store %arg5[%c4_57, %c0_58, %c0_59], %185 {strides = array<i32>} : memref<36x16x128xf32, #tpu.memory_space<vmem>>, vector<1x16x128xf32>,
    %c5_60 = arith.constant 5 : index
    %c0_61 = arith.constant 0 : index
    %c0_62 = arith.constant 0 : index
    %186 = vector.load %arg5[%c5_60, %c0_61, %c0_62] : memref<36x16x128xf32, #tpu.memory_space<vmem>>, vector<1x16x128xf32>
    %187 = vector.shape_cast %186 : vector<1x16x128xf32> to vector<16x128xf32>
    %188 = vector.shape_cast %164 : vector<16x128xf32> to vector<1x16x128xf32>
    tpu.vector_store %arg5[%c5_60, %c0_61, %c0_62], %188 {strides = array<i32>} : memref<36x16x128xf32, #tpu.memory_space<vmem>>, vector<1x16x128xf32>,
    %c6_63 = arith.constant 6 : index
    %c0_64 = arith.constant 0 : index
    %c0_65 = arith.constant 0 : index
    %189 = vector.load %arg5[%c6_63, %c0_64, %c0_65] : memref<36x16x128xf32, #tpu.memory_space<vmem>>, vector<1x16x128xf32>
    %190 = vector.shape_cast %189 : vector<1x16x128xf32> to vector<16x128xf32>
    %191 = vector.shape_cast %166 : vector<16x128xf32> to vector<1x16x128xf32>
    tpu.vector_store %arg5[%c6_63, %c0_64, %c0_65], %191 {strides = array<i32>} : memref<36x16x128xf32, #tpu.memory_space<vmem>>, vector<1x16x128xf32>,
    %c7_66 = arith.constant 7 : index
    %c0_67 = arith.constant 0 : index
    %c0_68 = arith.constant 0 : index
    %192 = vector.load %arg5[%c7_66, %c0_67, %c0_68] : memref<36x16x128xf32, #tpu.memory_space<vmem>>, vector<1x16x128xf32>
    %193 = vector.shape_cast %192 : vector<1x16x128xf32> to vector<16x128xf32>
    %194 = vector.shape_cast %168 : vector<16x128xf32> to vector<1x16x128xf32>
    tpu.vector_store %arg5[%c7_66, %c0_67, %c0_68], %194 {strides = array<i32>} : memref<36x16x128xf32, #tpu.memory_space<vmem>>, vector<1x16x128xf32>,
    %c8_69 = arith.constant 8 : index
    %c0_70 = arith.constant 0 : index
    %c0_71 = arith.constant 0 : index
    %195 = vector.load %arg5[%c8_69, %c0_70, %c0_71] : memref<36x16x128xf32, #tpu.memory_space<vmem>>, vector<1x16x128xf32>
    %196 = vector.shape_cast %195 : vector<1x16x128xf32> to vector<16x128xf32>
    %197 = vector.shape_cast %170 : vector<16x128xf32> to vector<1x16x128xf32>
    tpu.vector_store %arg5[%c8_69, %c0_70, %c0_71], %197 {strides = array<i32>} : memref<36x16x128xf32, #tpu.memory_space<vmem>>, vector<1x16x128xf32>,
    %198 = arith.mulf %90, %122 : vector<16x128xf32>
    %199 = arith.mulf %198, %152 : vector<16x128xf32>
    %200 = arith.mulf %90, %129 : vector<16x128xf32>
    %201 = arith.mulf %200, %152 : vector<16x128xf32>
    %202 = arith.mulf %90, %136 : vector<16x128xf32>
    %203 = arith.mulf %202, %152 : vector<16x128xf32>
    %204 = arith.mulf %92, %122 : vector<16x128xf32>
    %205 = arith.mulf %204, %152 : vector<16x128xf32>
    %206 = arith.mulf %92, %129 : vector<16x128xf32>
    %207 = arith.mulf %206, %152 : vector<16x128xf32>
    %208 = arith.mulf %92, %136 : vector<16x128xf32>
    %209 = arith.mulf %208, %152 : vector<16x128xf32>
    %210 = arith.mulf %94, %122 : vector<16x128xf32>
    %211 = arith.mulf %210, %152 : vector<16x128xf32>
    %212 = arith.mulf %94, %129 : vector<16x128xf32>
    %213 = arith.mulf %212, %152 : vector<16x128xf32>
    %214 = arith.mulf %94, %136 : vector<16x128xf32>
    %215 = arith.mulf %214, %152 : vector<16x128xf32>
    %c9_72 = arith.constant 9 : index
    %c0_73 = arith.constant 0 : index
    %c0_74 = arith.constant 0 : index
    %216 = vector.load %arg5[%c9_72, %c0_73, %c0_74] : memref<36x16x128xf32, #tpu.memory_space<vmem>>, vector<1x16x128xf32>
    %217 = vector.shape_cast %216 : vector<1x16x128xf32> to vector<16x128xf32>
    %218 = vector.shape_cast %199 : vector<16x128xf32> to vector<1x16x128xf32>
    tpu.vector_store %arg5[%c9_72, %c0_73, %c0_74], %218 {strides = array<i32>} : memref<36x16x128xf32, #tpu.memory_space<vmem>>, vector<1x16x128xf32>,
    %c10_75 = arith.constant 10 : index
    %c0_76 = arith.constant 0 : index
    %c0_77 = arith.constant 0 : index
    %219 = vector.load %arg5[%c10_75, %c0_76, %c0_77] : memref<36x16x128xf32, #tpu.memory_space<vmem>>, vector<1x16x128xf32>
    %220 = vector.shape_cast %219 : vector<1x16x128xf32> to vector<16x128xf32>
    %221 = vector.shape_cast %201 : vector<16x128xf32> to vector<1x16x128xf32>
    tpu.vector_store %arg5[%c10_75, %c0_76, %c0_77], %221 {strides = array<i32>} : memref<36x16x128xf32, #tpu.memory_space<vmem>>, vector<1x16x128xf32>,
    %c11_78 = arith.constant 11 : index
    %c0_79 = arith.constant 0 : index
    %c0_80 = arith.constant 0 : index
    %222 = vector.load %arg5[%c11_78, %c0_79, %c0_80] : memref<36x16x128xf32, #tpu.memory_space<vmem>>, vector<1x16x128xf32>
    %223 = vector.shape_cast %222 : vector<1x16x128xf32> to vector<16x128xf32>
    %224 = vector.shape_cast %203 : vector<16x128xf32> to vector<1x16x128xf32>
    tpu.vector_store %arg5[%c11_78, %c0_79, %c0_80], %224 {strides = array<i32>} : memref<36x16x128xf32, #tpu.memory_space<vmem>>, vector<1x16x128xf32>,
    %c12_81 = arith.constant 12 : index
    %c0_82 = arith.constant 0 : index
    %c0_83 = arith.constant 0 : index
    %225 = vector.load %arg5[%c12_81, %c0_82, %c0_83] : memref<36x16x128xf32, #tpu.memory_space<vmem>>, vector<1x16x128xf32>
    %226 = vector.shape_cast %225 : vector<1x16x128xf32> to vector<16x128xf32>
    %227 = vector.shape_cast %205 : vector<16x128xf32> to vector<1x16x128xf32>
    tpu.vector_store %arg5[%c12_81, %c0_82, %c0_83], %227 {strides = array<i32>} : memref<36x16x128xf32, #tpu.memory_space<vmem>>, vector<1x16x128xf32>,
    %c13_84 = arith.constant 13 : index
    %c0_85 = arith.constant 0 : index
    %c0_86 = arith.constant 0 : index
    %228 = vector.load %arg5[%c13_84, %c0_85, %c0_86] : memref<36x16x128xf32, #tpu.memory_space<vmem>>, vector<1x16x128xf32>
    %229 = vector.shape_cast %228 : vector<1x16x128xf32> to vector<16x128xf32>
    %230 = vector.shape_cast %207 : vector<16x128xf32> to vector<1x16x128xf32>
    tpu.vector_store %arg5[%c13_84, %c0_85, %c0_86], %230 {strides = array<i32>} : memref<36x16x128xf32, #tpu.memory_space<vmem>>, vector<1x16x128xf32>,
    %c14_87 = arith.constant 14 : index
    %c0_88 = arith.constant 0 : index
    %c0_89 = arith.constant 0 : index
    %231 = vector.load %arg5[%c14_87, %c0_88, %c0_89] : memref<36x16x128xf32, #tpu.memory_space<vmem>>, vector<1x16x128xf32>
    %232 = vector.shape_cast %231 : vector<1x16x128xf32> to vector<16x128xf32>
    %233 = vector.shape_cast %209 : vector<16x128xf32> to vector<1x16x128xf32>
    tpu.vector_store %arg5[%c14_87, %c0_88, %c0_89], %233 {strides = array<i32>} : memref<36x16x128xf32, #tpu.memory_space<vmem>>, vector<1x16x128xf32>,
    %c15_90 = arith.constant 15 : index
    %c0_91 = arith.constant 0 : index
    %c0_92 = arith.constant 0 : index
    %234 = vector.load %arg5[%c15_90, %c0_91, %c0_92] : memref<36x16x128xf32, #tpu.memory_space<vmem>>, vector<1x16x128xf32>
    %235 = vector.shape_cast %234 : vector<1x16x128xf32> to vector<16x128xf32>
    %236 = vector.shape_cast %211 : vector<16x128xf32> to vector<1x16x128xf32>
    tpu.vector_store %arg5[%c15_90, %c0_91, %c0_92], %236 {strides = array<i32>} : memref<36x16x128xf32, #tpu.memory_space<vmem>>, vector<1x16x128xf32>,
    %c16_93 = arith.constant 16 : index
    %c0_94 = arith.constant 0 : index
    %c0_95 = arith.constant 0 : index
    %237 = vector.load %arg5[%c16_93, %c0_94, %c0_95] : memref<36x16x128xf32, #tpu.memory_space<vmem>>, vector<1x16x128xf32>
    %238 = vector.shape_cast %237 : vector<1x16x128xf32> to vector<16x128xf32>
    %239 = vector.shape_cast %213 : vector<16x128xf32> to vector<1x16x128xf32>
    tpu.vector_store %arg5[%c16_93, %c0_94, %c0_95], %239 {strides = array<i32>} : memref<36x16x128xf32, #tpu.memory_space<vmem>>, vector<1x16x128xf32>,
    %c17_96 = arith.constant 17 : index
    %c0_97 = arith.constant 0 : index
    %c0_98 = arith.constant 0 : index
    %240 = vector.load %arg5[%c17_96, %c0_97, %c0_98] : memref<36x16x128xf32, #tpu.memory_space<vmem>>, vector<1x16x128xf32>
    %241 = vector.shape_cast %240 : vector<1x16x128xf32> to vector<16x128xf32>
    %242 = vector.shape_cast %215 : vector<16x128xf32> to vector<1x16x128xf32>
    tpu.vector_store %arg5[%c17_96, %c0_97, %c0_98], %242 {strides = array<i32>} : memref<36x16x128xf32, #tpu.memory_space<vmem>>, vector<1x16x128xf32>,
    %243 = arith.mulf %101, %122 : vector<16x128xf32>
    %244 = arith.mulf %108, %129 : vector<16x128xf32>
    %245 = arith.addf %243, %244 : vector<16x128xf32>
    %246 = arith.mulf %115, %136 : vector<16x128xf32>
    %247 = arith.addf %245, %246 : vector<16x128xf32>
    %248 = arith.mulf %144, %152 : vector<16x128xf32>
    %249 = arith.mulf %247, %248 : vector<16x128xf32>
    %250 = arith.mulf %249, %249 : vector<16x128xf32>
    %cst_99 = arith.constant 1.000000e+00 : f32
    %251 = vector.broadcast %cst_99 : f32 to vector<16x128xf32>
    %252 = arith.subf %251, %250 : vector<16x128xf32>
    %cst_100 = arith.constant 9.99999996E-13 : f32
    %253 = vector.broadcast %cst_100 : f32 to vector<16x128xf32>
    %254 = arith.maximumf %252, %253 : vector<16x128xf32>
    %255 = math.rsqrt %254 : vector<16x128xf32>
    %cst_101 = arith.constant 0.000000e+00 : f32
    %256 = vector.broadcast %cst_101 : f32 to vector<16x128xf32>
    %257 = arith.subf %256, %255 : vector<16x128xf32>
    %258 = arith.mulf %144, %144 : vector<16x128xf32>
    %259 = arith.mulf %152, %152 : vector<16x128xf32>
    %260 = arith.mulf %122, %248 : vector<16x128xf32>
    %261 = arith.mulf %249, %101 : vector<16x128xf32>
    %262 = arith.mulf %261, %258 : vector<16x128xf32>
    %263 = arith.subf %260, %262 : vector<16x128xf32>
    %264 = arith.mulf %129, %248 : vector<16x128xf32>
    %265 = arith.mulf %249, %108 : vector<16x128xf32>
    %266 = arith.mulf %265, %258 : vector<16x128xf32>
    %267 = arith.subf %264, %266 : vector<16x128xf32>
    %268 = arith.mulf %136, %248 : vector<16x128xf32>
    %269 = arith.mulf %249, %115 : vector<16x128xf32>
    %270 = arith.mulf %269, %258 : vector<16x128xf32>
    %271 = arith.subf %268, %270 : vector<16x128xf32>
    %272 = arith.mulf %101, %248 : vector<16x128xf32>
    %273 = arith.mulf %249, %122 : vector<16x128xf32>
    %274 = arith.mulf %273, %259 : vector<16x128xf32>
    %275 = arith.subf %272, %274 : vector<16x128xf32>
    %276 = arith.mulf %108, %248 : vector<16x128xf32>
    %277 = arith.mulf %249, %129 : vector<16x128xf32>
    %278 = arith.mulf %277, %259 : vector<16x128xf32>
    %279 = arith.subf %276, %278 : vector<16x128xf32>
    %280 = arith.mulf %115, %248 : vector<16x128xf32>
    %281 = arith.mulf %249, %136 : vector<16x128xf32>
    %282 = arith.mulf %281, %259 : vector<16x128xf32>
    %283 = arith.subf %280, %282 : vector<16x128xf32>
    %284 = arith.mulf %84, %263 : vector<16x128xf32>
    %285 = arith.mulf %90, %275 : vector<16x128xf32>
    %286 = arith.addf %284, %285 : vector<16x128xf32>
    %287 = arith.mulf %257, %286 : vector<16x128xf32>
    %288 = arith.mulf %84, %267 : vector<16x128xf32>
    %289 = arith.mulf %90, %279 : vector<16x128xf32>
    %290 = arith.addf %288, %289 : vector<16x128xf32>
    %291 = arith.mulf %257, %290 : vector<16x128xf32>
    %292 = arith.mulf %84, %271 : vector<16x128xf32>
    %293 = arith.mulf %90, %283 : vector<16x128xf32>
    %294 = arith.addf %292, %293 : vector<16x128xf32>
    %295 = arith.mulf %257, %294 : vector<16x128xf32>
    %296 = arith.mulf %86, %263 : vector<16x128xf32>
    %297 = arith.mulf %92, %275 : vector<16x128xf32>
    %298 = arith.addf %296, %297 : vector<16x128xf32>
    %299 = arith.mulf %257, %298 : vector<16x128xf32>
    %300 = arith.mulf %86, %267 : vector<16x128xf32>
    %301 = arith.mulf %92, %279 : vector<16x128xf32>
    %302 = arith.addf %300, %301 : vector<16x128xf32>
    %303 = arith.mulf %257, %302 : vector<16x128xf32>
    %304 = arith.mulf %86, %271 : vector<16x128xf32>
    %305 = arith.mulf %92, %283 : vector<16x128xf32>
    %306 = arith.addf %304, %305 : vector<16x128xf32>
    %307 = arith.mulf %257, %306 : vector<16x128xf32>
    %308 = arith.mulf %88, %263 : vector<16x128xf32>
    %309 = arith.mulf %94, %275 : vector<16x128xf32>
    %310 = arith.addf %308, %309 : vector<16x128xf32>
    %311 = arith.mulf %257, %310 : vector<16x128xf32>
    %312 = arith.mulf %88, %267 : vector<16x128xf32>
    %313 = arith.mulf %94, %279 : vector<16x128xf32>
    %314 = arith.addf %312, %313 : vector<16x128xf32>
    %315 = arith.mulf %257, %314 : vector<16x128xf32>
    %316 = arith.mulf %88, %271 : vector<16x128xf32>
    %317 = arith.mulf %94, %283 : vector<16x128xf32>
    %318 = arith.addf %316, %317 : vector<16x128xf32>
    %319 = arith.mulf %257, %318 : vector<16x128xf32>
    %c18 = arith.constant 18 : index
    %c0_102 = arith.constant 0 : index
    %c0_103 = arith.constant 0 : index
    %320 = vector.load %arg5[%c18, %c0_102, %c0_103] : memref<36x16x128xf32, #tpu.memory_space<vmem>>, vector<1x16x128xf32>
    %321 = vector.shape_cast %320 : vector<1x16x128xf32> to vector<16x128xf32>
    %322 = vector.shape_cast %287 : vector<16x128xf32> to vector<1x16x128xf32>
    tpu.vector_store %arg5[%c18, %c0_102, %c0_103], %322 {strides = array<i32>} : memref<36x16x128xf32, #tpu.memory_space<vmem>>, vector<1x16x128xf32>,
    %c19 = arith.constant 19 : index
    %c0_104 = arith.constant 0 : index
    %c0_105 = arith.constant 0 : index
    %323 = vector.load %arg5[%c19, %c0_104, %c0_105] : memref<36x16x128xf32, #tpu.memory_space<vmem>>, vector<1x16x128xf32>
    %324 = vector.shape_cast %323 : vector<1x16x128xf32> to vector<16x128xf32>
    %325 = vector.shape_cast %291 : vector<16x128xf32> to vector<1x16x128xf32>
    tpu.vector_store %arg5[%c19, %c0_104, %c0_105], %325 {strides = array<i32>} : memref<36x16x128xf32, #tpu.memory_space<vmem>>, vector<1x16x128xf32>,
    %c20 = arith.constant 20 : index
    %c0_106 = arith.constant 0 : index
    %c0_107 = arith.constant 0 : index
    %326 = vector.load %arg5[%c20, %c0_106, %c0_107] : memref<36x16x128xf32, #tpu.memory_space<vmem>>, vector<1x16x128xf32>
    %327 = vector.shape_cast %326 : vector<1x16x128xf32> to vector<16x128xf32>
    %328 = vector.shape_cast %295 : vector<16x128xf32> to vector<1x16x128xf32>
    tpu.vector_store %arg5[%c20, %c0_106, %c0_107], %328 {strides = array<i32>} : memref<36x16x128xf32, #tpu.memory_space<vmem>>, vector<1x16x128xf32>,
    %c21 = arith.constant 21 : index
    %c0_108 = arith.constant 0 : index
    %c0_109 = arith.constant 0 : index
    %329 = vector.load %arg5[%c21, %c0_108, %c0_109] : memref<36x16x128xf32, #tpu.memory_space<vmem>>, vector<1x16x128xf32>
    %330 = vector.shape_cast %329 : vector<1x16x128xf32> to vector<16x128xf32>
    %331 = vector.shape_cast %299 : vector<16x128xf32> to vector<1x16x128xf32>
    tpu.vector_store %arg5[%c21, %c0_108, %c0_109], %331 {strides = array<i32>} : memref<36x16x128xf32, #tpu.memory_space<vmem>>, vector<1x16x128xf32>,
    %c22 = arith.constant 22 : index
    %c0_110 = arith.constant 0 : index
    %c0_111 = arith.constant 0 : index
    %332 = vector.load %arg5[%c22, %c0_110, %c0_111] : memref<36x16x128xf32, #tpu.memory_space<vmem>>, vector<1x16x128xf32>
    %333 = vector.shape_cast %332 : vector<1x16x128xf32> to vector<16x128xf32>
    %334 = vector.shape_cast %303 : vector<16x128xf32> to vector<1x16x128xf32>
    tpu.vector_store %arg5[%c22, %c0_110, %c0_111], %334 {strides = array<i32>} : memref<36x16x128xf32, #tpu.memory_space<vmem>>, vector<1x16x128xf32>,
    %c23 = arith.constant 23 : index
    %c0_112 = arith.constant 0 : index
    %c0_113 = arith.constant 0 : index
    %335 = vector.load %arg5[%c23, %c0_112, %c0_113] : memref<36x16x128xf32, #tpu.memory_space<vmem>>, vector<1x16x128xf32>
    %336 = vector.shape_cast %335 : vector<1x16x128xf32> to vector<16x128xf32>
    %337 = vector.shape_cast %307 : vector<16x128xf32> to vector<1x16x128xf32>
    tpu.vector_store %arg5[%c23, %c0_112, %c0_113], %337 {strides = array<i32>} : memref<36x16x128xf32, #tpu.memory_space<vmem>>, vector<1x16x128xf32>,
    %c24 = arith.constant 24 : index
    %c0_114 = arith.constant 0 : index
    %c0_115 = arith.constant 0 : index
    %338 = vector.load %arg5[%c24, %c0_114, %c0_115] : memref<36x16x128xf32, #tpu.memory_space<vmem>>, vector<1x16x128xf32>
    %339 = vector.shape_cast %338 : vector<1x16x128xf32> to vector<16x128xf32>
    %340 = vector.shape_cast %311 : vector<16x128xf32> to vector<1x16x128xf32>
    tpu.vector_store %arg5[%c24, %c0_114, %c0_115], %340 {strides = array<i32>} : memref<36x16x128xf32, #tpu.memory_space<vmem>>, vector<1x16x128xf32>,
    %c25 = arith.constant 25 : index
    %c0_116 = arith.constant 0 : index
    %c0_117 = arith.constant 0 : index
    %341 = vector.load %arg5[%c25, %c0_116, %c0_117] : memref<36x16x128xf32, #tpu.memory_space<vmem>>, vector<1x16x128xf32>
    %342 = vector.shape_cast %341 : vector<1x16x128xf32> to vector<16x128xf32>
    %343 = vector.shape_cast %315 : vector<16x128xf32> to vector<1x16x128xf32>
    tpu.vector_store %arg5[%c25, %c0_116, %c0_117], %343 {strides = array<i32>} : memref<36x16x128xf32, #tpu.memory_space<vmem>>, vector<1x16x128xf32>,
    %c26 = arith.constant 26 : index
    %c0_118 = arith.constant 0 : index
    %c0_119 = arith.constant 0 : index
    %344 = vector.load %arg5[%c26, %c0_118, %c0_119] : memref<36x16x128xf32, #tpu.memory_space<vmem>>, vector<1x16x128xf32>
    %345 = vector.shape_cast %344 : vector<1x16x128xf32> to vector<16x128xf32>
    %346 = vector.shape_cast %319 : vector<16x128xf32> to vector<1x16x128xf32>
    tpu.vector_store %arg5[%c26, %c0_118, %c0_119], %346 {strides = array<i32>} : memref<36x16x128xf32, #tpu.memory_space<vmem>>, vector<1x16x128xf32>,
    %347 = arith.mulf %108, %136 : vector<16x128xf32>
    %348 = arith.mulf %115, %129 : vector<16x128xf32>
    %349 = arith.subf %347, %348 : vector<16x128xf32>
    %350 = arith.mulf %115, %122 : vector<16x128xf32>
    %351 = arith.mulf %101, %136 : vector<16x128xf32>
    %352 = arith.subf %350, %351 : vector<16x128xf32>
    %353 = arith.mulf %101, %129 : vector<16x128xf32>
    %354 = arith.mulf %108, %122 : vector<16x128xf32>
    %355 = arith.subf %353, %354 : vector<16x128xf32>
    %356 = arith.mulf %349, %349 : vector<16x128xf32>
    %357 = arith.mulf %352, %352 : vector<16x128xf32>
    %358 = arith.addf %356, %357 : vector<16x128xf32>
    %359 = arith.mulf %355, %355 : vector<16x128xf32>
    %360 = arith.addf %358, %359 : vector<16x128xf32>
    %cst_120 = arith.constant 1.000000e-24 : f32
    %361 = vector.broadcast %cst_120 : f32 to vector<16x128xf32>
    %362 = arith.maximumf %360, %361 : vector<16x128xf32>
    %363 = math.rsqrt %362 : vector<16x128xf32>
    %cst_121 = arith.constant 5.000000e-01 : f32
    %364 = vector.broadcast %cst_121 : f32 to vector<16x128xf32>
    %365 = arith.mulf %364, %363 : vector<16x128xf32>
    %366 = arith.mulf %129, %355 : vector<16x128xf32>
    %367 = arith.mulf %136, %352 : vector<16x128xf32>
    %368 = arith.subf %366, %367 : vector<16x128xf32>
    %369 = arith.mulf %136, %349 : vector<16x128xf32>
    %370 = arith.mulf %122, %355 : vector<16x128xf32>
    %371 = arith.subf %369, %370 : vector<16x128xf32>
    %372 = arith.mulf %122, %352 : vector<16x128xf32>
    %373 = arith.mulf %129, %349 : vector<16x128xf32>
    %374 = arith.subf %372, %373 : vector<16x128xf32>
    %375 = arith.mulf %352, %115 : vector<16x128xf32>
    %376 = arith.mulf %355, %108 : vector<16x128xf32>
    %377 = arith.subf %375, %376 : vector<16x128xf32>
    %378 = arith.mulf %355, %101 : vector<16x128xf32>
    %379 = arith.mulf %349, %115 : vector<16x128xf32>
    %380 = arith.subf %378, %379 : vector<16x128xf32>
    %381 = arith.mulf %349, %108 : vector<16x128xf32>
    %382 = arith.mulf %352, %101 : vector<16x128xf32>
    %383 = arith.subf %381, %382 : vector<16x128xf32>
    %384 = arith.mulf %84, %368 : vector<16x128xf32>
    %385 = arith.mulf %90, %377 : vector<16x128xf32>
    %386 = arith.addf %384, %385 : vector<16x128xf32>
    %387 = arith.mulf %365, %386 : vector<16x128xf32>
    %388 = arith.mulf %84, %371 : vector<16x128xf32>
    %389 = arith.mulf %90, %380 : vector<16x128xf32>
    %390 = arith.addf %388, %389 : vector<16x128xf32>
    %391 = arith.mulf %365, %390 : vector<16x128xf32>
    %392 = arith.mulf %84, %374 : vector<16x128xf32>
    %393 = arith.mulf %90, %383 : vector<16x128xf32>
    %394 = arith.addf %392, %393 : vector<16x128xf32>
    %395 = arith.mulf %365, %394 : vector<16x128xf32>
    %396 = arith.mulf %86, %368 : vector<16x128xf32>
    %397 = arith.mulf %92, %377 : vector<16x128xf32>
    %398 = arith.addf %396, %397 : vector<16x128xf32>
    %399 = arith.mulf %365, %398 : vector<16x128xf32>
    %400 = arith.mulf %86, %371 : vector<16x128xf32>
    %401 = arith.mulf %92, %380 : vector<16x128xf32>
    %402 = arith.addf %400, %401 : vector<16x128xf32>
    %403 = arith.mulf %365, %402 : vector<16x128xf32>
    %404 = arith.mulf %86, %374 : vector<16x128xf32>
    %405 = arith.mulf %92, %383 : vector<16x128xf32>
    %406 = arith.addf %404, %405 : vector<16x128xf32>
    %407 = arith.mulf %365, %406 : vector<16x128xf32>
    %408 = arith.mulf %88, %368 : vector<16x128xf32>
    %409 = arith.mulf %94, %377 : vector<16x128xf32>
    %410 = arith.addf %408, %409 : vector<16x128xf32>
    %411 = arith.mulf %365, %410 : vector<16x128xf32>
    %412 = arith.mulf %88, %371 : vector<16x128xf32>
    %413 = arith.mulf %94, %380 : vector<16x128xf32>
    %414 = arith.addf %412, %413 : vector<16x128xf32>
    %415 = arith.mulf %365, %414 : vector<16x128xf32>
    %416 = arith.mulf %88, %374 : vector<16x128xf32>
    %417 = arith.mulf %94, %383 : vector<16x128xf32>
    %418 = arith.addf %416, %417 : vector<16x128xf32>
    %419 = arith.mulf %365, %418 : vector<16x128xf32>
    %c27 = arith.constant 27 : index
    %c0_122 = arith.constant 0 : index
    %c0_123 = arith.constant 0 : index
    %420 = vector.load %arg5[%c27, %c0_122, %c0_123] : memref<36x16x128xf32, #tpu.memory_space<vmem>>, vector<1x16x128xf32>
    %421 = vector.shape_cast %420 : vector<1x16x128xf32> to vector<16x128xf32>
    %422 = vector.shape_cast %387 : vector<16x128xf32> to vector<1x16x128xf32>
    tpu.vector_store %arg5[%c27, %c0_122, %c0_123], %422 {strides = array<i32>} : memref<36x16x128xf32, #tpu.memory_space<vmem>>, vector<1x16x128xf32>,
    %c28 = arith.constant 28 : index
    %c0_124 = arith.constant 0 : index
    %c0_125 = arith.constant 0 : index
    %423 = vector.load %arg5[%c28, %c0_124, %c0_125] : memref<36x16x128xf32, #tpu.memory_space<vmem>>, vector<1x16x128xf32>
    %424 = vector.shape_cast %423 : vector<1x16x128xf32> to vector<16x128xf32>
    %425 = vector.shape_cast %391 : vector<16x128xf32> to vector<1x16x128xf32>
    tpu.vector_store %arg5[%c28, %c0_124, %c0_125], %425 {strides = array<i32>} : memref<36x16x128xf32, #tpu.memory_space<vmem>>, vector<1x16x128xf32>,
    %c29 = arith.constant 29 : index
    %c0_126 = arith.constant 0 : index
    %c0_127 = arith.constant 0 : index
    %426 = vector.load %arg5[%c29, %c0_126, %c0_127] : memref<36x16x128xf32, #tpu.memory_space<vmem>>, vector<1x16x128xf32>
    %427 = vector.shape_cast %426 : vector<1x16x128xf32> to vector<16x128xf32>
    %428 = vector.shape_cast %395 : vector<16x128xf32> to vector<1x16x128xf32>
    tpu.vector_store %arg5[%c29, %c0_126, %c0_127], %428 {strides = array<i32>} : memref<36x16x128xf32, #tpu.memory_space<vmem>>, vector<1x16x128xf32>,
    %c30 = arith.constant 30 : index
    %c0_128 = arith.constant 0 : index
    %c0_129 = arith.constant 0 : index
    %429 = vector.load %arg5[%c30, %c0_128, %c0_129] : memref<36x16x128xf32, #tpu.memory_space<vmem>>, vector<1x16x128xf32>
    %430 = vector.shape_cast %429 : vector<1x16x128xf32> to vector<16x128xf32>
    %431 = vector.shape_cast %399 : vector<16x128xf32> to vector<1x16x128xf32>
    tpu.vector_store %arg5[%c30, %c0_128, %c0_129], %431 {strides = array<i32>} : memref<36x16x128xf32, #tpu.memory_space<vmem>>, vector<1x16x128xf32>,
    %c31 = arith.constant 31 : index
    %c0_130 = arith.constant 0 : index
    %c0_131 = arith.constant 0 : index
    %432 = vector.load %arg5[%c31, %c0_130, %c0_131] : memref<36x16x128xf32, #tpu.memory_space<vmem>>, vector<1x16x128xf32>
    %433 = vector.shape_cast %432 : vector<1x16x128xf32> to vector<16x128xf32>
    %434 = vector.shape_cast %403 : vector<16x128xf32> to vector<1x16x128xf32>
    tpu.vector_store %arg5[%c31, %c0_130, %c0_131], %434 {strides = array<i32>} : memref<36x16x128xf32, #tpu.memory_space<vmem>>, vector<1x16x128xf32>,
    %c32 = arith.constant 32 : index
    %c0_132 = arith.constant 0 : index
    %c0_133 = arith.constant 0 : index
    %435 = vector.load %arg5[%c32, %c0_132, %c0_133] : memref<36x16x128xf32, #tpu.memory_space<vmem>>, vector<1x16x128xf32>
    %436 = vector.shape_cast %435 : vector<1x16x128xf32> to vector<16x128xf32>
    %437 = vector.shape_cast %407 : vector<16x128xf32> to vector<1x16x128xf32>
    tpu.vector_store %arg5[%c32, %c0_132, %c0_133], %437 {strides = array<i32>} : memref<36x16x128xf32, #tpu.memory_space<vmem>>, vector<1x16x128xf32>,
    %c33 = arith.constant 33 : index
    %c0_134 = arith.constant 0 : index
    %c0_135 = arith.constant 0 : index
    %438 = vector.load %arg5[%c33, %c0_134, %c0_135] : memref<36x16x128xf32, #tpu.memory_space<vmem>>, vector<1x16x128xf32>
    %439 = vector.shape_cast %438 : vector<1x16x128xf32> to vector<16x128xf32>
    %440 = vector.shape_cast %411 : vector<16x128xf32> to vector<1x16x128xf32>
    tpu.vector_store %arg5[%c33, %c0_134, %c0_135], %440 {strides = array<i32>} : memref<36x16x128xf32, #tpu.memory_space<vmem>>, vector<1x16x128xf32>,
    %c34 = arith.constant 34 : index
    %c0_136 = arith.constant 0 : index
    %c0_137 = arith.constant 0 : index
    %441 = vector.load %arg5[%c34, %c0_136, %c0_137] : memref<36x16x128xf32, #tpu.memory_space<vmem>>, vector<1x16x128xf32>
    %442 = vector.shape_cast %441 : vector<1x16x128xf32> to vector<16x128xf32>
    %443 = vector.shape_cast %415 : vector<16x128xf32> to vector<1x16x128xf32>
    tpu.vector_store %arg5[%c34, %c0_136, %c0_137], %443 {strides = array<i32>} : memref<36x16x128xf32, #tpu.memory_space<vmem>>, vector<1x16x128xf32>,
    %c35 = arith.constant 35 : index
    %c0_138 = arith.constant 0 : index
    %c0_139 = arith.constant 0 : index
    %444 = vector.load %arg5[%c35, %c0_138, %c0_139] : memref<36x16x128xf32, #tpu.memory_space<vmem>>, vector<1x16x128xf32>
    %445 = vector.shape_cast %444 : vector<1x16x128xf32> to vector<16x128xf32>
    %446 = vector.shape_cast %419 : vector<16x128xf32> to vector<1x16x128xf32>
    tpu.vector_store %arg5[%c35, %c0_138, %c0_139], %446 {strides = array<i32>} : memref<36x16x128xf32, #tpu.memory_space<vmem>>, vector<1x16x128xf32>,
    return
  }
  func.func @transform_0(%arg0: i32) -> i32 {
    %c0_i32 = arith.constant 0 : i32
    %c0_i32_0 = arith.constant 0 : i32
    return %c0_i32 : i32
  }
  func.func @transform_1(%arg0: i32) -> (i32, i32, i32) {
    %c0_i32 = arith.constant 0 : i32
    %c0_i32_0 = arith.constant 0 : i32
    %c0_i32_1 = arith.constant 0 : i32
    return %c0_i32, %arg0, %c0_i32_0 : i32, i32, i32
  }
  func.func @transform_2(%arg0: i32) -> (i32, i32, i32) {
    %c0_i32 = arith.constant 0 : i32
    %c0_i32_0 = arith.constant 0 : i32
    %c0_i32_1 = arith.constant 0 : i32
    return %c0_i32, %arg0, %c0_i32_0 : i32, i32, i32
  }
  func.func @transform_3(%arg0: i32) -> (i32, i32, i32) {
    %c0_i32 = arith.constant 0 : i32
    %c0_i32_0 = arith.constant 0 : i32
    %c0_i32_1 = arith.constant 0 : i32
    return %c0_i32, %arg0, %c0_i32_0 : i32, i32, i32
  }
  func.func @transform_4(%arg0: i32) -> (i32, i32, i32) {
    %c0_i32 = arith.constant 0 : i32
    %c0_i32_0 = arith.constant 0 : i32
    %c0_i32_1 = arith.constant 0 : i32
    return %c0_i32, %arg0, %c0_i32_0 : i32, i32, i32
  }
}

</mosaic_0001>

<llo_original>
// kernel: op_grad_forward.2
$region0: #{op_grad_forward.2}
  #allocation0 [shape = 'u32[]', space=smem, size = 0x4, offset = 0x4, fixed_abs, tag = 'smem constant byte address 0x4 - core index']
  #allocation1 [shape = 'u32[72,128]{1,0:T(1,128)}', space=vmem, size = 0x9000, scoped, tag = 'internal scratch']
  %s0 = inlined_call_operand.vmem [shape: f32[18], index: 0, kind: input, shape index: {}]
  %s1 = inlined_call_operand.vmem [shape: s32[1,16,128], index: 1, kind: input, shape index: {}]
  %s2 = inlined_call_operand.vmem [shape: f32[3,16,128], index: 2, kind: input, shape index: {}]
  %s3 = inlined_call_operand.vmem [shape: f32[18,16,128], index: 3, kind: output, shape index: {}]
  %s4 = sld [smem:[#allocation0]]
  $region26: #{op_grad_forward.2} parent=0
    _
  %s6 = ssub.s32 1, %s4
  %s7 = scalar_select 0, %s6, %s4
  $region1: #{op_grad_forward.2} parent=0
    #allocation2 [shape = 'u8[512]{0}', space=smem, size = 0x200, scoped, tag = 'input window, operand 0, single buffered']
    #allocation3 [shape = 's32[1]{0}', space=sflag, size = 0x4, scoped, tag = 'scoped memory for op_grad_forward.2']
    %8 = vsyncpa [#allocation3], 0
    // Predicated region
    $region2: #{op_grad_forward.2} parent=1 // pred_check
      _
    $region3: #{op_grad_forward.2} parent=1 // pred_check_branch
      %10 = sbr.rel (0) target = $region5
    $region4: #{op_grad_forward.2} parent=1 // pred_region
      %12 = vsyncadd [#allocation3], 0
      %s14 = sshll.u32 %s0, 4
      %s15 = int_to_ptr.vmem [resolvable:$true] %s14
      %17 = dma.vmem_to_smem %s15, 16, [#allocation2], [#allocation3]
    $region5: #{op_grad_forward.2} parent=1 // pred_fallthru
      _
    // Predicated region
    $region6: #{op_grad_forward.2} parent=1 // pred_check
      _
    $region7: #{op_grad_forward.2} parent=1 // pred_check_branch
      %19 = sbr.rel (0) target = $region9
    $region8: #{op_grad_forward.2} parent=1 // pred_region
      _
    $region9: #{op_grad_forward.2} parent=1 // pred_fallthru
      _
    // Predicated region
    $region10: #{op_grad_forward.2} parent=1 // pred_check
      _
    $region11: #{op_grad_forward.2} parent=1 // pred_check_branch
      %21 = sbr.rel (0) target = $region13
    $region12: #{op_grad_forward.2} parent=1 // pred_region
      _
    $region13: #{op_grad_forward.2} parent=1 // pred_fallthru
      _
    // Predicated region
    $region14: #{op_grad_forward.2} parent=1 // pred_check
      _
    $region15: #{op_grad_forward.2} parent=1 // pred_check_branch
      %23 = sbr.rel (0) target = $region17
    $region16: #{op_grad_forward.2} parent=1 // pred_region
      %25 = dma.done [#allocation3], 16
    $region17: #{op_grad_forward.2} parent=1 // pred_fallthru
      _
    %26 = sfence
    %v27 = vld [vmem:[%s1] sm:$0xff]
    %v28 = vld [vmem:[%s1 + $0x8] sm:$0xff]
    %s29 = sld [smem:[#allocation2]]
    %v30 = vstv %s29
    %v31 = vadd.f32 %v30, 0.0
    %vm32 = vcmp.eq.s32.totalorder %v27, 1
    %vm33 = vcmp.eq.s32.totalorder %v28, 1
    %s34 = sld [smem:[#allocation2 + $0x9]]
    %v35 = vstv %s34
    %v36 = vsel %vm32, %v35, %v31
    %v37 = vsel %vm33, %v35, %v31
    %s38 = sld [smem:[#allocation2 + $0x1]]
    %v39 = vstv %s38
    %v40 = vadd.f32 %v39, 0.0
    %s41 = sld [smem:[#allocation2 + $0xa]]
    %v42 = vstv %s41
    %v43 = vsel %vm32, %v42, %v40
    %v44 = vsel %vm33, %v42, %v40
    %s45 = sld [smem:[#allocation2 + $0x2]]
    %v46 = vstv %s45
    %v47 = vadd.f32 %v46, 0.0
    %s48 = sld [smem:[#allocation2 + $0xb]]
    %v49 = vstv %s48
    %v50 = vsel %vm32, %v49, %v47
    %v51 = vsel %vm33, %v49, %v47
    %s52 = sld [smem:[#allocation2 + $0x3]]
    %v53 = vstv %s52
    %v54 = vadd.f32 %v53, 0.0
    %s55 = sld [smem:[#allocation2 + $0xc]]
    %v56 = vstv %s55
    %v57 = vsel %vm32, %v56, %v54
    %v58 = vsel %vm33, %v56, %v54
    %s59 = sld [smem:[#allocation2 + $0x4]]
    %v60 = vstv %s59
    %v61 = vadd.f32 %v60, 0.0
    %s62 = sld [smem:[#allocation2 + $0xd]]
    %v63 = vstv %s62
    %v64 = vsel %vm32, %v63, %v61
    %v65 = vsel %vm33, %v63, %v61
    %s66 = sld [smem:[#allocation2 + $0x5]]
    %v67 = vstv %s66
    %v68 = vadd.f32 %v67, 0.0
    %s69 = sld [smem:[#allocation2 + $0xe]]
    %v70 = vstv %s69
    %v71 = vsel %vm32, %v70, %v68
    %v72 = vsel %vm33, %v70, %v68
    %s73 = sld [smem:[#allocation2 + $0x6]]
    %v74 = vstv %s73
    %v75 = vadd.f32 %v74, 0.0
    %s76 = sld [smem:[#allocation2 + $0xf]]
    %v77 = vstv %s76
    %v78 = vsel %vm32, %v77, %v75
    %v79 = vsel %vm33, %v77, %v75
    %s80 = sld [smem:[#allocation2 + $0x7]]
    %v81 = vstv %s80
    %v82 = vadd.f32 %v81, 0.0
    %s83 = sld [smem:[#allocation2 + $0x10]]
    %v84 = vstv %s83
    %v85 = vsel %vm32, %v84, %v82
    %v86 = vsel %vm33, %v84, %v82
    %s87 = sld [smem:[#allocation2 + $0x8]]
    %v88 = vstv %s87
    %v89 = vadd.f32 %v88, 0.0
    %s90 = sld [smem:[#allocation2 + $0x11]]
    %v91 = vstv %s90
    %v92 = vsel %vm32, %v91, %v89
    %v93 = vsel %vm33, %v91, %v89
    %v94 = vld [vmem:[%s2] sm:$0xff]
    %v95 = vld [vmem:[%s2 + $0x8] sm:$0xff]
    %s96 = scalar_lea.vmem %s2, 16
    %v97 = vld [vmem:[%s96] sm:$0xff]
    %v98 = vld [vmem:[%s96 + $0x8] sm:$0xff]
    %s99 = scalar_lea.vmem %s2, 32
    %v100 = vld [vmem:[%s99] sm:$0xff]
    %v101 = vld [vmem:[%s99 + $0x8] sm:$0xff]
    %v102 = vmul.f32 %v94, %v36
    %v103 = vmul.f32 %v95, %v37
    %v104 = vadd.f32 %v102, 0.0
    %v105 = vadd.f32 %v103, 0.0
    %v106 = vmul.f32 %v97, %v57
    %v107 = vmul.f32 %v98, %v58
    %v108 = vadd.f32 %v104, %v106
    %v109 = vadd.f32 %v105, %v107
    %v110 = vmul.f32 %v100, %v78
    %v111 = vmul.f32 %v101, %v79
    %v112 = vadd.f32 %v108, %v110
    %v113 = vadd.f32 %v109, %v111
    %v114 = vmul.f32 %v94, %v43
    %v115 = vmul.f32 %v95, %v44
    %v116 = vadd.f32 %v114, 0.0
    %v117 = vadd.f32 %v115, 0.0
    %v118 = vmul.f32 %v97, %v64
    %v119 = vmul.f32 %v98, %v65
    %v120 = vadd.f32 %v116, %v118
    %v121 = vadd.f32 %v117, %v119
    %v122 = vmul.f32 %v100, %v85
    %v123 = vmul.f32 %v101, %v86
    %v124 = vadd.f32 %v120, %v122
    %v125 = vadd.f32 %v121, %v123
    %v126 = vmul.f32 %v94, %v50
    %v127 = vmul.f32 %v95, %v51
    %v128 = vadd.f32 %v126, 0.0
    %v129 = vadd.f32 %v127, 0.0
    %v130 = vmul.f32 %v97, %v71
    %v131 = vmul.f32 %v98, %v72
    %v132 = vadd.f32 %v128, %v130
    %v133 = vadd.f32 %v129, %v131
    %v134 = vmul.f32 %v100, %v92
    %v135 = vmul.f32 %v101, %v93
    %v136 = vadd.f32 %v132, %v134
    %v137 = vadd.f32 %v133, %v135
    %v138 = vmul.f32 %v112, %v112
    %v139 = vmul.f32 %v113, %v113
    %v140 = vmul.f32 %v124, %v124
    %v141 = vmul.f32 %v125, %v125
    %v142 = vadd.f32 %v138, %v140
    %v143 = vadd.f32 %v139, %v141
    %v144 = vmul.f32 %v136, %v136
    %v145 = vmul.f32 %v137, %v137
    %v146 = vadd.f32 %v142, %v144
    %v147 = vadd.f32 %v143, %v145
    %v148 = vmax.f32 %v146, 1e-24
    %v149 = vmax.f32 %v147, 1e-24
    %v150 = vrsqrt.pop %v148
    %v151 = vmul.f32 %v150, %v148
    %v152 = vmul.f32 %v151, %v150
    %v153 = vmul.f32 0.5, %v152
    %v154 = vsub.f32 1.5, %v153
    %v155 = vmul.f32 %v150, %v154
    %vm156 = vweird.f32 %v148
    %vm157 = vweird.f32 %v150
    %vm158 = vmor %vm156, %vm157
    %v159 = vsel %vm158, %v150, %v155
    %v160 = vrsqrt.pop %v149
    %v161 = vmul.f32 %v160, %v149
    %v162 = vmul.f32 %v161, %v160
    %v163 = vmul.f32 0.5, %v162
    %v164 = vsub.f32 1.5, %v163
    %v165 = vmul.f32 %v160, %v164
    %vm166 = vweird.f32 %v149
    %vm167 = vweird.f32 %v160
    %vm168 = vmor %vm166, %vm167
    %v169 = vsel %vm168, %v160, %v165
    %v170 = vmul.f32 %v94, %v112
    %v171 = vmul.f32 %v95, %v113
    %v172 = vmul.f32 %v170, %v159
    %v173 = vmul.f32 %v171, %v169
    %v174 = vmul.f32 %v94, %v124
    %v175 = vmul.f32 %v95, %v125
    %v176 = vmul.f32 %v174, %v159
    %v177 = vmul.f32 %v175, %v169
    %v178 = vmul.f32 %v94, %v136
    %v179 = vmul.f32 %v95, %v137
    %v180 = vmul.f32 %v178, %v159
    %v181 = vmul.f32 %v179, %v169
    %v182 = vmul.f32 %v97, %v112
    %v183 = vmul.f32 %v98, %v113
    %v184 = vmul.f32 %v182, %v159
    %v185 = vmul.f32 %v183, %v169
    %v186 = vmul.f32 %v97, %v124
    %v187 = vmul.f32 %v98, %v125
    %v188 = vmul.f32 %v186, %v159
    %v189 = vmul.f32 %v187, %v169
    %v190 = vmul.f32 %v97, %v136
    %v191 = vmul.f32 %v98, %v137
    %v192 = vmul.f32 %v190, %v159
    %v193 = vmul.f32 %v191, %v169
    %v194 = vmul.f32 %v100, %v112
    %v195 = vmul.f32 %v101, %v113
    %v196 = vmul.f32 %v194, %v159
    %v197 = vmul.f32 %v195, %v169
    %v198 = vmul.f32 %v100, %v124
    %v199 = vmul.f32 %v101, %v125
    %v200 = vmul.f32 %v198, %v159
    %v201 = vmul.f32 %v199, %v169
    %v202 = vmul.f32 %v100, %v136
    %v203 = vmul.f32 %v101, %v137
    %v204 = vmul.f32 %v202, %v159
    %v205 = vmul.f32 %v203, %v169
    %206 = vst [vmem:[%s3] sm:$0xff] %v172
    %207 = vst [vmem:[%s3 + $0x8] sm:$0xff] %v173
    %s208 = scalar_lea.vmem %s3, 16
    %209 = vst [vmem:[%s208] sm:$0xff] %v176
    %210 = vst [vmem:[%s208 + $0x8] sm:$0xff] %v177
    %s211 = scalar_lea.vmem %s3, 32
    %212 = vst [vmem:[%s211] sm:$0xff] %v180
    %213 = vst [vmem:[%s211 + $0x8] sm:$0xff] %v181
    %s214 = scalar_lea.vmem %s3, 48
    %215 = vst [vmem:[%s214] sm:$0xff] %v184
    %216 = vst [vmem:[%s214 + $0x8] sm:$0xff] %v185
    %s217 = scalar_lea.vmem %s3, 64
    %218 = vst [vmem:[%s217] sm:$0xff] %v188
    %219 = vst [vmem:[%s217 + $0x8] sm:$0xff] %v189
    %s220 = scalar_lea.vmem %s3, 80
    %221 = vst [vmem:[%s220] sm:$0xff] %v192
    %222 = vst [vmem:[%s220 + $0x8] sm:$0xff] %v193
    %s223 = scalar_lea.vmem %s3, 96
    %224 = vst [vmem:[%s223] sm:$0xff] %v196
    %225 = vst [vmem:[%s223 + $0x8] sm:$0xff] %v197
    %s226 = scalar_lea.vmem %s3, 112
    %227 = vst [vmem:[%s226] sm:$0xff] %v200
    %228 = vst [vmem:[%s226 + $0x8] sm:$0xff] %v201
    %s229 = scalar_lea.vmem %s3, 128
    %230 = vst [vmem:[%s229] sm:$0xff] %v204
    %231 = vst [vmem:[%s229 + $0x8] sm:$0xff] %v205
    %v232 = vadd.f32 %v172, %v172
    %v233 = vadd.f32 %v173, %v173
    %v234 = vmul.f32 %v232, 0.5
    %v235 = vmul.f32 %v233, 0.5
    %v236 = vadd.f32 %v176, %v184
    %v237 = vadd.f32 %v177, %v185
    %v238 = vmul.f32 %v236, 0.5
    %v239 = vmul.f32 %v237, 0.5
    %v240 = vadd.f32 %v180, %v196
    %v241 = vadd.f32 %v181, %v197
    %v242 = vmul.f32 %v240, 0.5
    %v243 = vmul.f32 %v241, 0.5
    %v244 = vadd.f32 %v188, %v188
    %v245 = vadd.f32 %v189, %v189
    %v246 = vmul.f32 %v244, 0.5
    %v247 = vmul.f32 %v245, 0.5
    %v248 = vadd.f32 %v192, %v200
    %v249 = vadd.f32 %v193, %v201
    %v250 = vmul.f32 %v248, 0.5
    %v251 = vmul.f32 %v249, 0.5
    %v252 = vadd.f32 %v204, %v204
    %v253 = vadd.f32 %v205, %v205
    %v254 = vmul.f32 %v252, 0.5
    %v255 = vmul.f32 %v253, 0.5
    %s256 = scalar_lea.vmem %s3, 144
    %257 = vst [vmem:[%s256] sm:$0xff] %v234
    %258 = vst [vmem:[%s256 + $0x8] sm:$0xff] %v235
    %s259 = scalar_lea.vmem %s3, 160
    %260 = vst [vmem:[%s259] sm:$0xff] %v238
    %261 = vst [vmem:[%s259 + $0x8] sm:$0xff] %v239
    %s262 = scalar_lea.vmem %s3, 176
    %263 = vst [vmem:[%s262] sm:$0xff] %v242
    %264 = vst [vmem:[%s262 + $0x8] sm:$0xff] %v243
    %s265 = scalar_lea.vmem %s3, 192
    %266 = vst [vmem:[%s265] sm:$0xff] %v238
    %267 = vst [vmem:[%s265 + $0x8] sm:$0xff] %v239
    %s268 = scalar_lea.vmem %s3, 208
    %269 = vst [vmem:[%s268] sm:$0xff] %v246
    %270 = vst [vmem:[%s268 + $0x8] sm:$0xff] %v247
    %s271 = scalar_lea.vmem %s3, 224
    %272 = vst [vmem:[%s271] sm:$0xff] %v250
    %273 = vst [vmem:[%s271 + $0x8] sm:$0xff] %v251
    %s274 = scalar_lea.vmem %s3, 240
    %275 = vst [vmem:[%s274] sm:$0xff] %v242
    %276 = vst [vmem:[%s274 + $0x8] sm:$0xff] %v243
    %s277 = scalar_lea.vmem %s3, 256
    %278 = vst [vmem:[%s277] sm:$0xff] %v250
    %279 = vst [vmem:[%s277 + $0x8] sm:$0xff] %v251
    %s280 = scalar_lea.vmem %s3, 272
    %281 = vst [vmem:[%s280] sm:$0xff] %v254
    %282 = vst [vmem:[%s280 + $0x8] sm:$0xff] %v255
    // Predicated region
    $region18: #{op_grad_forward.2} parent=1 // pred_check
      _
    $region19: #{op_grad_forward.2} parent=1 // pred_check_branch
      %284 = sbr.rel (0) target = $region21
    $region20: #{op_grad_forward.2} parent=1 // pred_region
      _
    $region21: #{op_grad_forward.2} parent=1 // pred_fallthru
      _
    // Predicated region
    $region22: #{op_grad_forward.2} parent=1 // pred_check
      _
    $region23: #{op_grad_forward.2} parent=1 // pred_check_branch
      %286 = sbr.rel (0) target = $region25
    $region24: #{op_grad_forward.2} parent=1 // pred_region
      _
    $region25: #{op_grad_forward.2} parent=1 // pred_fallthru
      _
    %287 = vsyncpa [#allocation3], 1

// kernel: op_grad_forward.3
$region0: #{op_grad_forward.3}
  #allocation0 [shape = 'u32[]', space=smem, size = 0x4, offset = 0x4, fixed_abs, tag = 'smem constant byte address 0x4 - core index']
  #allocation1 [shape = 'u32[72,128]{1,0:T(1,128)}', space=vmem, size = 0x9000, scoped, tag = 'internal scratch']
  %s0 = inlined_call_operand.vmem [shape: f32[18], index: 0, kind: input, shape index: {}]
  %s1 = inlined_call_operand.vmem [shape: s32[1,16,128], index: 1, kind: input, shape index: {}]
  %s2 = inlined_call_operand.vmem [shape: f32[3,16,128], index: 2, kind: input, shape index: {}]
  %s3 = inlined_call_operand.vmem [shape: f32[3,16,128], index: 3, kind: input, shape index: {}]
  %s4 = inlined_call_operand.vmem [shape: f32[36,16,128], index: 4, kind: output, shape index: {}]
  %s5 = sld [smem:[#allocation0]]
  $region30: #{op_grad_forward.3} parent=0
    _
  %s7 = ssub.s32 1, %s5
  %s8 = scalar_select 0, %s7, %s5
  $region1: #{op_grad_forward.3} parent=0
    #allocation2 [shape = 'u8[512]{0}', space=smem, size = 0x200, scoped, tag = 'input window, operand 0, single buffered']
    #allocation3 [shape = 's32[1]{0}', space=sflag, size = 0x4, scoped, tag = 'scoped memory for op_grad_forward.3']
    %9 = vsyncpa [#allocation3], 0
    // Predicated region
    $region2: #{op_grad_forward.3} parent=1 // pred_check
      _
    $region3: #{op_grad_forward.3} parent=1 // pred_check_branch
      %11 = sbr.rel (0) target = $region5
    $region4: #{op_grad_forward.3} parent=1 // pred_region
      %13 = vsyncadd [#allocation3], 0
      %s15 = sshll.u32 %s0, 4
      %s16 = int_to_ptr.vmem [resolvable:$true] %s15
      %18 = dma.vmem_to_smem %s16, 16, [#allocation2], [#allocation3]
    $region5: #{op_grad_forward.3} parent=1 // pred_fallthru
      _
    // Predicated region
    $region6: #{op_grad_forward.3} parent=1 // pred_check
      _
    $region7: #{op_grad_forward.3} parent=1 // pred_check_branch
      %20 = sbr.rel (0) target = $region9
    $region8: #{op_grad_forward.3} parent=1 // pred_region
      _
    $region9: #{op_grad_forward.3} parent=1 // pred_fallthru
      _
    // Predicated region
    $region10: #{op_grad_forward.3} parent=1 // pred_check
      _
    $region11: #{op_grad_forward.3} parent=1 // pred_check_branch
      %22 = sbr.rel (0) target = $region13
    $region12: #{op_grad_forward.3} parent=1 // pred_region
      _
    $region13: #{op_grad_forward.3} parent=1 // pred_fallthru
      _
    // Predicated region
    $region14: #{op_grad_forward.3} parent=1 // pred_check
      _
    $region15: #{op_grad_forward.3} parent=1 // pred_check_branch
      %24 = sbr.rel (0) target = $region17
    $region16: #{op_grad_forward.3} parent=1 // pred_region
      _
    $region17: #{op_grad_forward.3} parent=1 // pred_fallthru
      _
    // Predicated region
    $region18: #{op_grad_forward.3} parent=1 // pred_check
      _
    $region19: #{op_grad_forward.3} parent=1 // pred_check_branch
      %26 = sbr.rel (0) target = $region21
    $region20: #{op_grad_forward.3} parent=1 // pred_region
      %28 = dma.done [#allocation3], 16
    $region21: #{op_grad_forward.3} parent=1 // pred_fallthru
      _
    %29 = sfence
    %v30 = vld [vmem:[%s1] sm:$0xff]
    %v31 = vld [vmem:[%s1 + $0x8] sm:$0xff]
    %s32 = sld [smem:[#allocation2]]
    %v33 = vstv %s32
    %v34 = vadd.f32 %v33, 0.0
    %vm35 = vcmp.eq.s32.totalorder %v30, 1
    %vm36 = vcmp.eq.s32.totalorder %v31, 1
    %s37 = sld [smem:[#allocation2 + $0x9]]
    %v38 = vstv %s37
    %v39 = vsel %vm35, %v38, %v34
    %v40 = vsel %vm36, %v38, %v34
    %s41 = sld [smem:[#allocation2 + $0x1]]
    %v42 = vstv %s41
    %v43 = vadd.f32 %v42, 0.0
    %s44 = sld [smem:[#allocation2 + $0xa]]
    %v45 = vstv %s44
    %v46 = vsel %vm35, %v45, %v43
    %v47 = vsel %vm36, %v45, %v43
    %s48 = sld [smem:[#allocation2 + $0x2]]
    %v49 = vstv %s48
    %v50 = vadd.f32 %v49, 0.0
    %s51 = sld [smem:[#allocation2 + $0xb]]
    %v52 = vstv %s51
    %v53 = vsel %vm35, %v52, %v50
    %v54 = vsel %vm36, %v52, %v50
    %s55 = sld [smem:[#allocation2 + $0x3]]
    %v56 = vstv %s55
    %v57 = vadd.f32 %v56, 0.0
    %s58 = sld [smem:[#allocation2 + $0xc]]
    %v59 = vstv %s58
    %v60 = vsel %vm35, %v59, %v57
    %v61 = vsel %vm36, %v59, %v57
    %s62 = sld [smem:[#allocation2 + $0x4]]
    %v63 = vstv %s62
    %v64 = vadd.f32 %v63, 0.0
    %s65 = sld [smem:[#allocation2 + $0xd]]
    %v66 = vstv %s65
    %v67 = vsel %vm35, %v66, %v64
    %v68 = vsel %vm36, %v66, %v64
    %s69 = sld [smem:[#allocation2 + $0x5]]
    %v70 = vstv %s69
    %v71 = vadd.f32 %v70, 0.0
    %s72 = sld [smem:[#allocation2 + $0xe]]
    %v73 = vstv %s72
    %v74 = vsel %vm35, %v73, %v71
    %v75 = vsel %vm36, %v73, %v71
    %s76 = sld [smem:[#allocation2 + $0x6]]
    %v77 = vstv %s76
    %v78 = vadd.f32 %v77, 0.0
    %s79 = sld [smem:[#allocation2 + $0xf]]
    %v80 = vstv %s79
    %v81 = vsel %vm35, %v80, %v78
    %v82 = vsel %vm36, %v80, %v78
    %s83 = sld [smem:[#allocation2 + $0x7]]
    %v84 = vstv %s83
    %v85 = vadd.f32 %v84, 0.0
    %s86 = sld [smem:[#allocation2 + $0x10]]
    %v87 = vstv %s86
    %v88 = vsel %vm35, %v87, %v85
    %v89 = vsel %vm36, %v87, %v85
    %s90 = sld [smem:[#allocation2 + $0x8]]
    %v91 = vstv %s90
    %v92 = vadd.f32 %v91, 0.0
    %s93 = sld [smem:[#allocation2 + $0x11]]
    %v94 = vstv %s93
    %v95 = vsel %vm35, %v94, %v92
    %v96 = vsel %vm36, %v94, %v92
    %v97 = vld [vmem:[%s2] sm:$0xff]
    %v98 = vld [vmem:[%s2 + $0x8] sm:$0xff]
    %s99 = scalar_lea.vmem %s2, 16
    %v100 = vld [vmem:[%s99] sm:$0xff]
    %v101 = vld [vmem:[%s99 + $0x8] sm:$0xff]
    %s102 = scalar_lea.vmem %s2, 32
    %v103 = vld [vmem:[%s102] sm:$0xff]
    %v104 = vld [vmem:[%s102 + $0x8] sm:$0xff]
    %v105 = vld [vmem:[%s3] sm:$0xff]
    %v106 = vld [vmem:[%s3 + $0x8] sm:$0xff]
    %s107 = scalar_lea.vmem %s3, 16
    %v108 = vld [vmem:[%s107] sm:$0xff]
    %v109 = vld [vmem:[%s107 + $0x8] sm:$0xff]
    %s110 = scalar_lea.vmem %s3, 32
    %v111 = vld [vmem:[%s110] sm:$0xff]
    %v112 = vld [vmem:[%s110 + $0x8] sm:$0xff]
    %v113 = vmul.f32 %v97, %v39
    %v114 = vmul.f32 %v98, %v40
    %v115 = vadd.f32 %v113, 0.0
    %v116 = vadd.f32 %v114, 0.0
    %v117 = vmul.f32 %v100, %v60
    %v118 = vmul.f32 %v101, %v61
    %v119 = vadd.f32 %v115, %v117
    %v120 = vadd.f32 %v116, %v118
    %v121 = vmul.f32 %v103, %v81
    %v122 = vmul.f32 %v104, %v82
    %v123 = vadd.f32 %v119, %v121
    %v124 = vadd.f32 %v120, %v122
    %v125 = vmul.f32 %v97, %v46
    %v126 = vmul.f32 %v98, %v47
    %v127 = vadd.f32 %v125, 0.0
    %v128 = vadd.f32 %v126, 0.0
    %v129 = vmul.f32 %v100, %v67
    %v130 = vmul.f32 %v101, %v68
    %v131 = vadd.f32 %v127, %v129
    %v132 = vadd.f32 %v128, %v130
    %v133 = vmul.f32 %v103, %v88
    %v134 = vmul.f32 %v104, %v89
    %v135 = vadd.f32 %v131, %v133
    %v136 = vadd.f32 %v132, %v134
    %v137 = vmul.f32 %v97, %v53
    %v138 = vmul.f32 %v98, %v54
    %v139 = vadd.f32 %v137, 0.0
    %v140 = vadd.f32 %v138, 0.0
    %v141 = vmul.f32 %v100, %v74
    %v142 = vmul.f32 %v101, %v75
    %v143 = vadd.f32 %v139, %v141
    %v144 = vadd.f32 %v140, %v142
    %v145 = vmul.f32 %v103, %v95
    %v146 = vmul.f32 %v104, %v96
    %v147 = vadd.f32 %v143, %v145
    %v148 = vadd.f32 %v144, %v146
    %v149 = vmul.f32 %v105, %v39
    %v150 = vmul.f32 %v106, %v40
    %v151 = vadd.f32 %v149, 0.0
    %v152 = vadd.f32 %v150, 0.0
    %v153 = vmul.f32 %v108, %v60
    %v154 = vmul.f32 %v109, %v61
    %v155 = vadd.f32 %v151, %v153
    %v156 = vadd.f32 %v152, %v154
    %v157 = vmul.f32 %v111, %v81
    %v158 = vmul.f32 %v112, %v82
    %v159 = vadd.f32 %v155, %v157
    %v160 = vadd.f32 %v156, %v158
    %v161 = vmul.f32 %v105, %v46
    %v162 = vmul.f32 %v106, %v47
    %v163 = vadd.f32 %v161, 0.0
    %v164 = vadd.f32 %v162, 0.0
    %v165 = vmul.f32 %v108, %v67
    %v166 = vmul.f32 %v109, %v68
    %v167 = vadd.f32 %v163, %v165
    %v168 = vadd.f32 %v164, %v166
    %v169 = vmul.f32 %v111, %v88
    %v170 = vmul.f32 %v112, %v89
    %v171 = vadd.f32 %v167, %v169
    %v172 = vadd.f32 %v168, %v170
    %v173 = vmul.f32 %v105, %v53
    %v174 = vmul.f32 %v106, %v54
    %v175 = vadd.f32 %v173, 0.0
    %v176 = vadd.f32 %v174, 0.0
    %v177 = vmul.f32 %v108, %v74
    %v178 = vmul.f32 %v109, %v75
    %v179 = vadd.f32 %v175, %v177
    %v180 = vadd.f32 %v176, %v178
    %v181 = vmul.f32 %v111, %v95
    %v182 = vmul.f32 %v112, %v96
    %v183 = vadd.f32 %v179, %v181
    %v184 = vadd.f32 %v180, %v182
    %v185 = vmul.f32 %v123, %v123
    %v186 = vmul.f32 %v124, %v124
    %v187 = vmul.f32 %v135, %v135
    %v188 = vmul.f32 %v136, %v136
    %v189 = vadd.f32 %v185, %v187
    %v190 = vadd.f32 %v186, %v188
    %v191 = vmul.f32 %v147, %v147
    %v192 = vmul.f32 %v148, %v148
    %v193 = vadd.f32 %v189, %v191
    %v194 = vadd.f32 %v190, %v192
    %v195 = vmax.f32 %v193, 1e-24
    %v196 = vmax.f32 %v194, 1e-24
    %v197 = vrsqrt.pop %v195
    %v198 = vmul.f32 %v197, %v195
    %v199 = vmul.f32 %v198, %v197
    %v200 = vmul.f32 0.5, %v199
    %v201 = vsub.f32 1.5, %v200
    %v202 = vmul.f32 %v197, %v201
    %vm203 = vweird.f32 %v195
    %vm204 = vweird.f32 %v197
    %vm205 = vmor %vm203, %vm204
    %v206 = vsel %vm205, %v197, %v202
    %v207 = vrsqrt.pop %v196
    %v208 = vmul.f32 %v207, %v196
    %v209 = vmul.f32 %v208, %v207
    %v210 = vmul.f32 0.5, %v209
    %v211 = vsub.f32 1.5, %v210
    %v212 = vmul.f32 %v207, %v211
    %vm213 = vweird.f32 %v196
    %vm214 = vweird.f32 %v207
    %vm215 = vmor %vm213, %vm214
    %v216 = vsel %vm215, %v207, %v212
    %v217 = vmul.f32 %v159, %v159
    %v218 = vmul.f32 %v160, %v160
    %v219 = vmul.f32 %v171, %v171
    %v220 = vmul.f32 %v172, %v172
    %v221 = vadd.f32 %v217, %v219
    %v222 = vadd.f32 %v218, %v220
    %v223 = vmul.f32 %v183, %v183
    %v224 = vmul.f32 %v184, %v184
    %v225 = vadd.f32 %v221, %v223
    %v226 = vadd.f32 %v222, %v224
    %v227 = vmax.f32 %v225, 1e-24
    %v228 = vmax.f32 %v226, 1e-24
    %v229 = vrsqrt.pop %v227
    %v230 = vmul.f32 %v229, %v227
    %v231 = vmul.f32 %v230, %v229
    %v232 = vmul.f32 0.5, %v231
    %v233 = vsub.f32 1.5, %v232
    %v234 = vmul.f32 %v229, %v233
    %vm235 = vweird.f32 %v227
    %vm236 = vweird.f32 %v229
    %vm237 = vmor %vm235, %vm236
    %v238 = vsel %vm237, %v229, %v234
    %v239 = vrsqrt.pop %v228
    %v240 = vmul.f32 %v239, %v228
    %v241 = vmul.f32 %v240, %v239
    %v242 = vmul.f32 0.5, %v241
    %v243 = vsub.f32 1.5, %v242
    %v244 = vmul.f32 %v239, %v243
    %vm245 = vweird.f32 %v228
    %vm246 = vweird.f32 %v239
    %vm247 = vmor %vm245, %vm246
    %v248 = vsel %vm247, %v239, %v244
    %v249 = vmul.f32 %v97, %v123
    %v250 = vmul.f32 %v98, %v124
    %v251 = vmul.f32 %v249, %v206
    %v252 = vmul.f32 %v250, %v216
    %v253 = vmul.f32 %v97, %v135
    %v254 = vmul.f32 %v98, %v136
    %v255 = vmul.f32 %v253, %v206
    %v256 = vmul.f32 %v254, %v216
    %v257 = vmul.f32 %v97, %v147
    %v258 = vmul.f32 %v98, %v148
    %v259 = vmul.f32 %v257, %v206
    %v260 = vmul.f32 %v258, %v216
    %v261 = vmul.f32 %v100, %v123
    %v262 = vmul.f32 %v101, %v124
    %v263 = vmul.f32 %v261, %v206
    %v264 = vmul.f32 %v262, %v216
    %v265 = vmul.f32 %v100, %v135
    %v266 = vmul.f32 %v101, %v136
    %v267 = vmul.f32 %v265, %v206
    %v268 = vmul.f32 %v266, %v216
    %v269 = vmul.f32 %v100, %v147
    %v270 = vmul.f32 %v101, %v148
    %v271 = vmul.f32 %v269, %v206
    %v272 = vmul.f32 %v270, %v216
    %v273 = vmul.f32 %v103, %v123
    %v274 = vmul.f32 %v104, %v124
    %v275 = vmul.f32 %v273, %v206
    %v276 = vmul.f32 %v274, %v216
    %v277 = vmul.f32 %v103, %v135
    %v278 = vmul.f32 %v104, %v136
    %v279 = vmul.f32 %v277, %v206
    %v280 = vmul.f32 %v278, %v216
    %v281 = vmul.f32 %v103, %v147
    %v282 = vmul.f32 %v104, %v148
    %v283 = vmul.f32 %v281, %v206
    %v284 = vmul.f32 %v282, %v216
    %285 = vst [vmem:[%s4] sm:$0xff] %v251
    %286 = vst [vmem:[%s4 + $0x8] sm:$0xff] %v252
    %s287 = scalar_lea.vmem %s4, 16
    %288 = vst [vmem:[%s287] sm:$0xff] %v255
    %289 = vst [vmem:[%s287 + $0x8] sm:$0xff] %v256
    %s290 = scalar_lea.vmem %s4, 32
    %291 = vst [vmem:[%s290] sm:$0xff] %v259
    %292 = vst [vmem:[%s290 + $0x8] sm:$0xff] %v260
    %s293 = scalar_lea.vmem %s4, 48
    %294 = vst [vmem:[%s293] sm:$0xff] %v263
    %295 = vst [vmem:[%s293 + $0x8] sm:$0xff] %v264
    %s296 = scalar_lea.vmem %s4, 64
    %297 = vst [vmem:[%s296] sm:$0xff] %v267
    %298 = vst [vmem:[%s296 + $0x8] sm:$0xff] %v268
    %s299 = scalar_lea.vmem %s4, 80
    %300 = vst [vmem:[%s299] sm:$0xff] %v271
    %301 = vst [vmem:[%s299 + $0x8] sm:$0xff] %v272
    %s302 = scalar_lea.vmem %s4, 96
    %303 = vst [vmem:[%s302] sm:$0xff] %v275
    %304 = vst [vmem:[%s302 + $0x8] sm:$0xff] %v276
    %s305 = scalar_lea.vmem %s4, 112
    %306 = vst [vmem:[%s305] sm:$0xff] %v279
    %307 = vst [vmem:[%s305 + $0x8] sm:$0xff] %v280
    %s308 = scalar_lea.vmem %s4, 128
    %309 = vst [vmem:[%s308] sm:$0xff] %v283
    %310 = vst [vmem:[%s308 + $0x8] sm:$0xff] %v284
    %v311 = vmul.f32 %v105, %v159
    %v312 = vmul.f32 %v106, %v160
    %v313 = vmul.f32 %v311, %v238
    %v314 = vmul.f32 %v312, %v248
    %v315 = vmul.f32 %v105, %v171
    %v316 = vmul.f32 %v106, %v172
    %v317 = vmul.f32 %v315, %v238
    %v318 = vmul.f32 %v316, %v248
    %v319 = vmul.f32 %v105, %v183
    %v320 = vmul.f32 %v106, %v184
    %v321 = vmul.f32 %v319, %v238
    %v322 = vmul.f32 %v320, %v248
    %v323 = vmul.f32 %v108, %v159
    %v324 = vmul.f32 %v109, %v160
    %v325 = vmul.f32 %v323, %v238
    %v326 = vmul.f32 %v324, %v248
    %v327 = vmul.f32 %v108, %v171
    %v328 = vmul.f32 %v109, %v172
    %v329 = vmul.f32 %v327, %v238
    %v330 = vmul.f32 %v328, %v248
    %v331 = vmul.f32 %v108, %v183
    %v332 = vmul.f32 %v109, %v184
    %v333 = vmul.f32 %v331, %v238
    %v334 = vmul.f32 %v332, %v248
    %v335 = vmul.f32 %v111, %v159
    %v336 = vmul.f32 %v112, %v160
    %v337 = vmul.f32 %v335, %v238
    %v338 = vmul.f32 %v336, %v248
    %v339 = vmul.f32 %v111, %v171
    %v340 = vmul.f32 %v112, %v172
    %v341 = vmul.f32 %v339, %v238
    %v342 = vmul.f32 %v340, %v248
    %v343 = vmul.f32 %v111, %v183
    %v344 = vmul.f32 %v112, %v184
    %v345 = vmul.f32 %v343, %v238
    %v346 = vmul.f32 %v344, %v248
    %s347 = scalar_lea.vmem %s4, 144
    %348 = vst [vmem:[%s347] sm:$0xff] %v313
    %349 = vst [vmem:[%s347 + $0x8] sm:$0xff] %v314
    %s350 = scalar_lea.vmem %s4, 160
    %351 = vst [vmem:[%s350] sm:$0xff] %v317
    %352 = vst [vmem:[%s350 + $0x8] sm:$0xff] %v318
    %s353 = scalar_lea.vmem %s4, 176
    %354 = vst [vmem:[%s353] sm:$0xff] %v321
    %355 = vst [vmem:[%s353 + $0x8] sm:$0xff] %v322
    %s356 = scalar_lea.vmem %s4, 192
    %357 = vst [vmem:[%s356] sm:$0xff] %v325
    %358 = vst [vmem:[%s356 + $0x8] sm:$0xff] %v326
    %s359 = scalar_lea.vmem %s4, 208
    %360 = vst [vmem:[%s359] sm:$0xff] %v329
    %361 = vst [vmem:[%s359 + $0x8] sm:$0xff] %v330
    %s362 = scalar_lea.vmem %s4, 224
    %363 = vst [vmem:[%s362] sm:$0xff] %v333
    %364 = vst [vmem:[%s362 + $0x8] sm:$0xff] %v334
    %s365 = scalar_lea.vmem %s4, 240
    %366 = vst [vmem:[%s365] sm:$0xff] %v337
    %367 = vst [vmem:[%s365 + $0x8] sm:$0xff] %v338
    %s368 = scalar_lea.vmem %s4, 256
    %369 = vst [vmem:[%s368] sm:$0xff] %v341
    %370 = vst [vmem:[%s368 + $0x8] sm:$0xff] %v342
    %s371 = scalar_lea.vmem %s4, 272
    %372 = vst [vmem:[%s371] sm:$0xff] %v345
    %373 = vst [vmem:[%s371 + $0x8] sm:$0xff] %v346
    %v374 = vmul.f32 %v123, %v159
    %v375 = vmul.f32 %v124, %v160
    %v376 = vmul.f32 %v135, %v171
    %v377 = vmul.f32 %v136, %v172
    %v378 = vadd.f32 %v374, %v376
    %v379 = vadd.f32 %v375, %v377
    %v380 = vmul.f32 %v147, %v183
    %v381 = vmul.f32 %v148, %v184
    %v382 = vadd.f32 %v378, %v380
    %v383 = vadd.f32 %v379, %v381
    %v384 = vmul.f32 %v206, %v238
    %v385 = vmul.f32 %v216, %v248
    %v386 = vmul.f32 %v382, %v384
    %v387 = vmul.f32 %v383, %v385
    %v388 = vmul.f32 %v386, %v386
    %v389 = vmul.f32 %v387, %v387
    %v390 = vsub.f32 1.0, %v388
    %v391 = vsub.f32 1.0, %v389
    %v392 = vmax.f32 %v390, 1e-12
    %v393 = vmax.f32 %v391, 1e-12
    %v394 = vrsqrt.pop %v392
    %v395 = vmul.f32 %v394, %v392
    %v396 = vmul.f32 %v395, %v394
    %v397 = vmul.f32 0.5, %v396
    %v398 = vsub.f32 1.5, %v397
    %v399 = vmul.f32 %v394, %v398
    %vm400 = vweird.f32 %v392
    %vm401 = vweird.f32 %v394
    %vm402 = vmor %vm400, %vm401
    %v403 = vsel %vm402, %v394, %v399
    %v404 = vrsqrt.pop %v393
    %v405 = vmul.f32 %v404, %v393
    %v406 = vmul.f32 %v405, %v404
    %v407 = vmul.f32 0.5, %v406
    %v408 = vsub.f32 1.5, %v407
    %v409 = vmul.f32 %v404, %v408
    %vm410 = vweird.f32 %v393
    %vm411 = vweird.f32 %v404
    %vm412 = vmor %vm410, %vm411
    %v413 = vsel %vm412, %v404, %v409
    %v414 = vsub.f32 0.0, %v403
    %v415 = vsub.f32 0.0, %v413
    %v416 = vmul.f32 %v206, %v206
    %v417 = vmul.f32 %v216, %v216
    %v418 = vmul.f32 %v238, %v238
    %v419 = vmul.f32 %v248, %v248
    %v420 = vmul.f32 %v159, %v384
    %v421 = vmul.f32 %v160, %v385
    %v422 = vmul.f32 %v386, %v123
    %v423 = vmul.f32 %v387, %v124
    %v424 = vmul.f32 %v422, %v416
    %v425 = vmul.f32 %v423, %v417
    %v426 = vsub.f32 %v420, %v424
    %v427 = vsub.f32 %v421, %v425
    %v428 = vmul.f32 %v171, %v384
    %v429 = vmul.f32 %v172, %v385
    %v430 = vmul.f32 %v386, %v135
    %v431 = vmul.f32 %v387, %v136
    %v432 = vmul.f32 %v430, %v416
    %v433 = vmul.f32 %v431, %v417
    %v434 = vsub.f32 %v428, %v432
    %v435 = vsub.f32 %v429, %v433
    %v436 = vmul.f32 %v183, %v384
    %v437 = vmul.f32 %v184, %v385
    %v438 = vmul.f32 %v386, %v147
    %v439 = vmul.f32 %v387, %v148
    %v440 = vmul.f32 %v438, %v416
    %v441 = vmul.f32 %v439, %v417
    %v442 = vsub.f32 %v436, %v440
    %v443 = vsub.f32 %v437, %v441
    %v444 = vmul.f32 %v123, %v384
    %v445 = vmul.f32 %v124, %v385
    %v446 = vmul.f32 %v386, %v159
    %v447 = vmul.f32 %v387, %v160
    %v448 = vmul.f32 %v446, %v418
    %v449 = vmul.f32 %v447, %v419
    %v450 = vsub.f32 %v444, %v448
    %v451 = vsub.f32 %v445, %v449
    %v452 = vmul.f32 %v135, %v384
    %v453 = vmul.f32 %v136, %v385
    %v454 = vmul.f32 %v386, %v171
    %v455 = vmul.f32 %v387, %v172
    %v456 = vmul.f32 %v454, %v418
    %v457 = vmul.f32 %v455, %v419
    %v458 = vsub.f32 %v452, %v456
    %v459 = vsub.f32 %v453, %v457
    %v460 = vmul.f32 %v147, %v384
    %v461 = vmul.f32 %v148, %v385
    %v462 = vmul.f32 %v386, %v183
    %v463 = vmul.f32 %v387, %v184
    %v464 = vmul.f32 %v462, %v418
    %v465 = vmul.f32 %v463, %v419
    %v466 = vsub.f32 %v460, %v464
    %v467 = vsub.f32 %v461, %v465
    %v468 = vmul.f32 %v97, %v426
    %v469 = vmul.f32 %v98, %v427
    %v470 = vmul.f32 %v105, %v450
    %v471 = vmul.f32 %v106, %v451
    %v472 = vadd.f32 %v468, %v470
    %v473 = vadd.f32 %v469, %v471
    %v474 = vmul.f32 %v414, %v472
    %v475 = vmul.f32 %v415, %v473
    %v476 = vmul.f32 %v97, %v434
    %v477 = vmul.f32 %v98, %v435
    %v478 = vmul.f32 %v105, %v458
    %v479 = vmul.f32 %v106, %v459
    %v480 = vadd.f32 %v476, %v478
    %v481 = vadd.f32 %v477, %v479
    %v482 = vmul.f32 %v414, %v480
    %v483 = vmul.f32 %v415, %v481
    %v484 = vmul.f32 %v97, %v442
    %v485 = vmul.f32 %v98, %v443
    %v486 = vmul.f32 %v105, %v466
    %v487 = vmul.f32 %v106, %v467
    %v488 = vadd.f32 %v484, %v486
    %v489 = vadd.f32 %v485, %v487
    %v490 = vmul.f32 %v414, %v488
    %v491 = vmul.f32 %v415, %v489
    %v492 = vmul.f32 %v100, %v426
    %v493 = vmul.f32 %v101, %v427
    %v494 = vmul.f32 %v108, %v450
    %v495 = vmul.f32 %v109, %v451
    %v496 = vadd.f32 %v492, %v494
    %v497 = vadd.f32 %v493, %v495
    %v498 = vmul.f32 %v414, %v496
    %v499 = vmul.f32 %v415, %v497
    %v500 = vmul.f32 %v100, %v434
    %v501 = vmul.f32 %v101, %v435
    %v502 = vmul.f32 %v108, %v458
    %v503 = vmul.f32 %v109, %v459
    %v504 = vadd.f32 %v500, %v502
    %v505 = vadd.f32 %v501, %v503
    %v506 = vmul.f32 %v414, %v504
    %v507 = vmul.f32 %v415, %v505
    %v508 = vmul.f32 %v100, %v442
    %v509 = vmul.f32 %v101, %v443
    %v510 = vmul.f32 %v108, %v466
    %v511 = vmul.f32 %v109, %v467
    %v512 = vadd.f32 %v508, %v510
    %v513 = vadd.f32 %v509, %v511
    %v514 = vmul.f32 %v414, %v512
    %v515 = vmul.f32 %v415, %v513
    %v516 = vmul.f32 %v103, %v426
    %v517 = vmul.f32 %v104, %v427
    %v518 = vmul.f32 %v111, %v450
    %v519 = vmul.f32 %v112, %v451
    %v520 = vadd.f32 %v516, %v518
    %v521 = vadd.f32 %v517, %v519
    %v522 = vmul.f32 %v414, %v520
    %v523 = vmul.f32 %v415, %v521
    %v524 = vmul.f32 %v103, %v434
    %v525 = vmul.f32 %v104, %v435
    %v526 = vmul.f32 %v111, %v458
    %v527 = vmul.f32 %v112, %v459
    %v528 = vadd.f32 %v524, %v526
    %v529 = vadd.f32 %v525, %v527
    %v530 = vmul.f32 %v414, %v528
    %v531 = vmul.f32 %v415, %v529
    %v532 = vmul.f32 %v103, %v442
    %v533 = vmul.f32 %v104, %v443
    %v534 = vmul.f32 %v111, %v466
    %v535 = vmul.f32 %v112, %v467
    %v536 = vadd.f32 %v532, %v534
    %v537 = vadd.f32 %v533, %v535
    %v538 = vmul.f32 %v414, %v536
    %v539 = vmul.f32 %v415, %v537
    %s540 = scalar_lea.vmem %s4, 288
    %541 = vst [vmem:[%s540] sm:$0xff] %v474
    %542 = vst [vmem:[%s540 + $0x8] sm:$0xff] %v475
    %s543 = scalar_lea.vmem %s4, 304
    %544 = vst [vmem:[%s543] sm:$0xff] %v482
    %545 = vst [vmem:[%s543 + $0x8] sm:$0xff] %v483
    %s546 = scalar_lea.vmem %s4, 320
    %547 = vst [vmem:[%s546] sm:$0xff] %v490
    %548 = vst [vmem:[%s546 + $0x8] sm:$0xff] %v491
    %s549 = scalar_lea.vmem %s4, 336
    %550 = vst [vmem:[%s549] sm:$0xff] %v498
    %551 = vst [vmem:[%s549 + $0x8] sm:$0xff] %v499
    %s552 = scalar_lea.vmem %s4, 352
    %553 = vst [vmem:[%s552] sm:$0xff] %v506
    %554 = vst [vmem:[%s552 + $0x8] sm:$0xff] %v507
    %s555 = scalar_lea.vmem %s4, 368
    %556 = vst [vmem:[%s555] sm:$0xff] %v514
    %557 = vst [vmem:[%s555 + $0x8] sm:$0xff] %v515
    %s558 = scalar_lea.vmem %s4, 384
    %559 = vst [vmem:[%s558] sm:$0xff] %v522
    %560 = vst [vmem:[%s558 + $0x8] sm:$0xff] %v523
    %s561 = scalar_lea.vmem %s4, 400
    %562 = vst [vmem:[%s561] sm:$0xff] %v530
    %563 = vst [vmem:[%s561 + $0x8] sm:$0xff] %v531
    %s564 = scalar_lea.vmem %s4, 416
    %565 = vst [vmem:[%s564] sm:$0xff] %v538
    %566 = vst [vmem:[%s564 + $0x8] sm:$0xff] %v539
    %v567 = vmul.f32 %v135, %v183
    %v568 = vmul.f32 %v136, %v184
    %v569 = vmul.f32 %v147, %v171
    %v570 = vmul.f32 %v148, %v172
    %v571 = vsub.f32 %v567, %v569
    %v572 = vsub.f32 %v568, %v570
    %v573 = vmul.f32 %v147, %v159
    %v574 = vmul.f32 %v148, %v160
    %v575 = vmul.f32 %v123, %v183
    %v576 = vmul.f32 %v124, %v184
    %v577 = vsub.f32 %v573, %v575
    %v578 = vsub.f32 %v574, %v576
    %v579 = vmul.f32 %v123, %v171
    %v580 = vmul.f32 %v124, %v172
    %v581 = vmul.f32 %v135, %v159
    %v582 = vmul.f32 %v136, %v160
    %v583 = vsub.f32 %v579, %v581
    %v584 = vsub.f32 %v580, %v582
    %v585 = vmul.f32 %v571, %v571
    %v586 = vmul.f32 %v572, %v572
    %v587 = vmul.f32 %v577, %v577
    %v588 = vmul.f32 %v578, %v578
    %v589 = vadd.f32 %v585, %v587
    %v590 = vadd.f32 %v586, %v588
    %v591 = vmul.f32 %v583, %v583
    %v592 = vmul.f32 %v584, %v584
    %v593 = vadd.f32 %v589, %v591
    %v594 = vadd.f32 %v590, %v592
    %v595 = vmax.f32 %v593, 1e-24
    %v596 = vmax.f32 %v594, 1e-24
    %v597 = vrsqrt.pop %v595
    %v598 = vmul.f32 %v597, %v595
    %v599 = vmul.f32 %v598, %v597
    %v600 = vmul.f32 0.5, %v599
    %v601 = vsub.f32 1.5, %v600
    %v602 = vmul.f32 %v597, %v601
    %vm603 = vweird.f32 %v595
    %vm604 = vweird.f32 %v597
    %vm605 = vmor %vm603, %vm604
    %v606 = vsel %vm605, %v597, %v602
    %v607 = vrsqrt.pop %v596
    %v608 = vmul.f32 %v607, %v596
    %v609 = vmul.f32 %v608, %v607
    %v610 = vmul.f32 0.5, %v609
    %v611 = vsub.f32 1.5, %v610
    %v612 = vmul.f32 %v607, %v611
    %vm613 = vweird.f32 %v596
    %vm614 = vweird.f32 %v607
    %vm615 = vmor %vm613, %vm614
    %v616 = vsel %vm615, %v607, %v612
    %v617 = vmul.f32 %v606, 0.5
    %v618 = vmul.f32 %v616, 0.5
    %v619 = vmul.f32 %v171, %v583
    %v620 = vmul.f32 %v172, %v584
    %v621 = vmul.f32 %v183, %v577
    %v622 = vmul.f32 %v184, %v578
    %v623 = vsub.f32 %v619, %v621
    %v624 = vsub.f32 %v620, %v622
    %v625 = vmul.f32 %v183, %v571
    %v626 = vmul.f32 %v184, %v572
    %v627 = vmul.f32 %v159, %v583
    %v628 = vmul.f32 %v160, %v584
    %v629 = vsub.f32 %v625, %v627
    %v630 = vsub.f32 %v626, %v628
    %v631 = vmul.f32 %v159, %v577
    %v632 = vmul.f32 %v160, %v578
    %v633 = vmul.f32 %v171, %v571
    %v634 = vmul.f32 %v172, %v572
    %v635 = vsub.f32 %v631, %v633
    %v636 = vsub.f32 %v632, %v634
    %v637 = vmul.f32 %v577, %v147
    %v638 = vmul.f32 %v578, %v148
    %v639 = vmul.f32 %v583, %v135
    %v640 = vmul.f32 %v584, %v136
    %v641 = vsub.f32 %v637, %v639
    %v642 = vsub.f32 %v638, %v640
    %v643 = vmul.f32 %v583, %v123
    %v644 = vmul.f32 %v584, %v124
    %v645 = vmul.f32 %v571, %v147
    %v646 = vmul.f32 %v572, %v148
    %v647 = vsub.f32 %v643, %v645
    %v648 = vsub.f32 %v644, %v646
    %v649 = vmul.f32 %v571, %v135
    %v650 = vmul.f32 %v572, %v136
    %v651 = vmul.f32 %v577, %v123
    %v652 = vmul.f32 %v578, %v124
    %v653 = vsub.f32 %v649, %v651
    %v654 = vsub.f32 %v650, %v652
    %v655 = vmul.f32 %v97, %v623
    %v656 = vmul.f32 %v98, %v624
    %v657 = vmul.f32 %v105, %v641
    %v658 = vmul.f32 %v106, %v642
    %v659 = vadd.f32 %v655, %v657
    %v660 = vadd.f32 %v656, %v658
    %v661 = vmul.f32 %v617, %v659
    %v662 = vmul.f32 %v618, %v660
    %v663 = vmul.f32 %v97, %v629
    %v664 = vmul.f32 %v98, %v630
    %v665 = vmul.f32 %v105, %v647
    %v666 = vmul.f32 %v106, %v648
    %v667 = vadd.f32 %v663, %v665
    %v668 = vadd.f32 %v664, %v666
    %v669 = vmul.f32 %v617, %v667
    %v670 = vmul.f32 %v618, %v668
    %v671 = vmul.f32 %v97, %v635
    %v672 = vmul.f32 %v98, %v636
    %v673 = vmul.f32 %v105, %v653
    %v674 = vmul.f32 %v106, %v654
    %v675 = vadd.f32 %v671, %v673
    %v676 = vadd.f32 %v672, %v674
    %v677 = vmul.f32 %v617, %v675
    %v678 = vmul.f32 %v618, %v676
    %v679 = vmul.f32 %v100, %v623
    %v680 = vmul.f32 %v101, %v624
    %v681 = vmul.f32 %v108, %v641
    %v682 = vmul.f32 %v109, %v642
    %v683 = vadd.f32 %v679, %v681
    %v684 = vadd.f32 %v680, %v682
    %v685 = vmul.f32 %v617, %v683
    %v686 = vmul.f32 %v618, %v684
    %v687 = vmul.f32 %v100, %v629
    %v688 = vmul.f32 %v101, %v630
    %v689 = vmul.f32 %v108, %v647
    %v690 = vmul.f32 %v109, %v648
    %v691 = vadd.f32 %v687, %v689
    %v692 = vadd.f32 %v688, %v690
    %v693 = vmul.f32 %v617, %v691
    %v694 = vmul.f32 %v618, %v692
    %v695 = vmul.f32 %v100, %v635
    %v696 = vmul.f32 %v101, %v636
    %v697 = vmul.f32 %v108, %v653
    %v698 = vmul.f32 %v109, %v654
    %v699 = vadd.f32 %v695, %v697
    %v700 = vadd.f32 %v696, %v698
    %v701 = vmul.f32 %v617, %v699
    %v702 = vmul.f32 %v618, %v700
    %v703 = vmul.f32 %v103, %v623
    %v704 = vmul.f32 %v104, %v624
    %v705 = vmul.f32 %v111, %v641
    %v706 = vmul.f32 %v112, %v642
    %v707 = vadd.f32 %v703, %v705
    %v708 = vadd.f32 %v704, %v706
    %v709 = vmul.f32 %v617, %v707
    %v710 = vmul.f32 %v618, %v708
    %v711 = vmul.f32 %v103, %v629
    %v712 = vmul.f32 %v104, %v630
    %v713 = vmul.f32 %v111, %v647
    %v714 = vmul.f32 %v112, %v648
    %v715 = vadd.f32 %v711, %v713
    %v716 = vadd.f32 %v712, %v714
    %v717 = vmul.f32 %v617, %v715
    %v718 = vmul.f32 %v618, %v716
    %v719 = vmul.f32 %v103, %v635
    %v720 = vmul.f32 %v104, %v636
    %v721 = vmul.f32 %v111, %v653
    %v722 = vmul.f32 %v112, %v654
    %v723 = vadd.f32 %v719, %v721
    %v724 = vadd.f32 %v720, %v722
    %v725 = vmul.f32 %v617, %v723
    %v726 = vmul.f32 %v618, %v724
    %s727 = scalar_lea.vmem %s4, 432
    %728 = vst [vmem:[%s727] sm:$0xff] %v661
    %729 = vst [vmem:[%s727 + $0x8] sm:$0xff] %v662
    %s730 = scalar_lea.vmem %s4, 448
    %731 = vst [vmem:[%s730] sm:$0xff] %v669
    %732 = vst [vmem:[%s730 + $0x8] sm:$0xff] %v670
    %s733 = scalar_lea.vmem %s4, 464
    %734 = vst [vmem:[%s733] sm:$0xff] %v677
    %735 = vst [vmem:[%s733 + $0x8] sm:$0xff] %v678
    %s736 = scalar_lea.vmem %s4, 480
    %737 = vst [vmem:[%s736] sm:$0xff] %v685
    %738 = vst [vmem:[%s736 + $0x8] sm:$0xff] %v686
    %s739 = scalar_lea.vmem %s4, 496
    %740 = vst [vmem:[%s739] sm:$0xff] %v693
    %741 = vst [vmem:[%s739 + $0x8] sm:$0xff] %v694
    %s742 = scalar_lea.vmem %s4, 512
    %743 = vst [vmem:[%s742] sm:$0xff] %v701
    %744 = vst [vmem:[%s742 + $0x8] sm:$0xff] %v702
    %s745 = scalar_lea.vmem %s4, 528
    %746 = vst [vmem:[%s745] sm:$0xff] %v709
    %747 = vst [vmem:[%s745 + $0x8] sm:$0xff] %v710
    %s748 = scalar_lea.vmem %s4, 544
    %749 = vst [vmem:[%s748] sm:$0xff] %v717
    %750 = vst [vmem:[%s748 + $0x8] sm:$0xff] %v718
    %s751 = scalar_lea.vmem %s4, 560
    %752 = vst [vmem:[%s751] sm:$0xff] %v725
    %753 = vst [vmem:[%s751 + $0x8] sm:$0xff] %v726
    // Predicated region
    $region22: #{op_grad_forward.3} parent=1 // pred_check
      _
    $region23: #{op_grad_forward.3} parent=1 // pred_check_branch
      %755 = sbr.rel (0) target = $region25
    $region24: #{op_grad_forward.3} parent=1 // pred_region
      _
    $region25: #{op_grad_forward.3} parent=1 // pred_fallthru
      _
    // Predicated region
    $region26: #{op_grad_forward.3} parent=1 // pred_check
      _
    $region27: #{op_grad_forward.3} parent=1 // pred_check_branch
      %757 = sbr.rel (0) target = $region29
    $region28: #{op_grad_forward.3} parent=1 // pred_region
      _
    $region29: #{op_grad_forward.3} parent=1 // pred_fallthru
      _
    %758 = vsyncpa [#allocation3], 1

</llo_original>
